<compile_context>
chip_gen: v5e
topology: v5e:2x2
jax: 0.10.0
libtpu: 0.0.40
codegen_flags: <defaults>
</compile_context>

<pallas_src>
import functools
import math

import jax
import jax.numpy as jnp
from jax.experimental import pallas as pl
from jax.experimental.pallas import tpu as pltpu


def _encoder_layer_kernel(
    x_ref, mask_ref,
    ln1_g_ref, ln1_b_ref,
    wq_ref, bq_ref, wk_ref, bk_ref, wv_ref, bv_ref, wo_ref, bo_ref,
    ln2_g_ref, ln2_b_ref,
    w1_ref, b1_ref, w2_ref, b2_ref,
    o_ref,
    *, num_heads: int, d_k: int, eps: float, block_b: int,
):
    S = x_ref.shape[-2]
    D = x_ref.shape[-1]
    scale = 1.0 / math.sqrt(d_k)
    f32 = jnp.float32
    bf16 = jnp.bfloat16

    # Hoist all small parameter loads out of the row/head loops.
    ln1_g, ln1_b = ln1_g_ref[...], ln1_b_ref[...]
    ln2_g, ln2_b = ln2_g_ref[...], ln2_b_ref[...]
    bo = bo_ref[...]
    b1 = b1_ref[...]
    b2 = b2_ref[...]

    def layer_norm(v, g, b):
        # torch semantics: mean / unbiased std (ddof=1), eps added to the std.
        mean = jnp.mean(v, axis=-1, keepdims=True)
        diff = v - mean
        var = jnp.sum(diff * diff, axis=-1, keepdims=True) / (D - 1)
        inv = pl.reciprocal(jnp.sqrt(var) + eps, approx=True)   # EUP, frees VPU
        return g * (diff * inv) + b

    for bi in range(block_b):                      # static unroll, block_b small
        x = x_ref[bi]                              # (S, D) f32
        # Hoist the mask compare out of the head loop (int8 -> i32 -> bool).
        masked = mask_ref[bi].astype(jnp.int32) == 0   # (S, S) bool, True = masked

        # ---- sublayer 1: multi-head self-attention ---------------------------
        xn1 = layer_norm(x, ln1_g, ln1_b)
        xn1_b = xn1.astype(bf16)                   # bf16 at the dot sites only

        y = jnp.zeros((S, D), f32)                 # per-head accumulation of W_o
        for h in range(num_heads):                 # static unroll over heads
            # Head-major weights: no lane slicing, no concatenate.
            qh = (jnp.dot(xn1_b, wq_ref[h], preferred_element_type=f32)
                  + bq_ref[h]) * scale             # fold 1/sqrt(d_k) into q
            kh = jnp.dot(xn1_b, wk_ref[h], preferred_element_type=f32) + bk_ref[h]
            vh = jnp.dot(xn1_b, wv_ref[h], preferred_element_type=f32) + bv_ref[h]

            scores = jax.lax.dot_general(
                qh.astype(bf16), kh.astype(bf16),
                (((1,), (1,)), ((), ())),
                preferred_element_type=f32)                        # (S, S)
            scores = jnp.where(masked, -1e9, scores)               # masked_fill
            m = jnp.max(scores, axis=-1, keepdims=True)
            e = jnp.exp(scores - m)
            p = e * pl.reciprocal(jnp.sum(e, axis=-1, keepdims=True), approx=True)

            ctx = jnp.dot(p.astype(bf16), vh.astype(bf16),
                          preferred_element_type=f32)              # (S, d_k)
            # Accumulate this head's slice of the output projection.
            y = y + jnp.dot(ctx.astype(bf16), wo_ref[h],
                            preferred_element_type=f32)            # (S, D)
        y = y + bo

        # residual; layer_dropout is identity at inference
        x1 = x + y

        # ---- sublayer 2: position-wise feed-forward ---------------------------
        xn2_b = layer_norm(x1, ln2_g, ln2_b).astype(bf16)
        hidden = jnp.maximum(
            jnp.dot(xn2_b, w1_ref[...], preferred_element_type=f32) + b1, 0.0)
        y2 = jnp.dot(hidden.astype(bf16), w2_ref[...],
                     preferred_element_type=f32) + b2

        o_ref[bi] = (x1 + y2).astype(o_ref.dtype)


def encoder_layer_forward(x, mask, params, *, num_heads, block_b=None):
    """x: (B, S, D) f32; mask: (B, S, S), nonzero = attend, 0 = masked."""
    B, S, D = x.shape
    assert D % num_heads == 0
    d_k = D // num_heads
    if block_b is None:
        block_b = math.gcd(B, 8)        # several batch rows per grid step
    assert B % block_b == 0

    f32 = jnp.float32
    bf16 = jnp.bfloat16

    # --- wrapper-side weight preprocessing (head-major, bf16 weights, f32 bias)
    def head_major_in(w):               # (D, D)[in,out] -> (H, D, d_k)
        return w.reshape(D, num_heads, d_k).transpose(1, 0, 2).astype(bf16)

    def head_major_bias(b):             # (1, D) -> (H, 1, d_k)
        return b.reshape(num_heads, 1, d_k).astype(f32)

    def head_major_out(w):              # (D, D)[in=concat heads,out] -> (H, d_k, D)
        return w.reshape(num_heads, d_k, D).astype(bf16)

    weights = (
        params["ln1_g"].astype(f32), params["ln1_b"].astype(f32),
        head_major_in(params["wq"]), head_major_bias(params["bq"]),
        head_major_in(params["wk"]), head_major_bias(params["bk"]),
        head_major_in(params["wv"]), head_major_bias(params["bv"]),
        head_major_out(params["wo"]), params["bo"].astype(f32),
        params["ln2_g"].astype(f32), params["ln2_b"].astype(f32),
        params["w1"].astype(bf16), params["b1"].astype(f32),
        params["w2"].astype(bf16), params["b2"].astype(f32),
    )

    # int8 mask stream: 4x less DMA than f32, semantics preserved (0 = masked).
    mask_i8 = (mask != 0).astype(jnp.int8)

    def full_block(a):                  # weights resident across all grid steps
        zeros = (0,) * a.ndim
        return pl.BlockSpec(a.shape, lambda b, _z=zeros: _z)

    kernel = functools.partial(
        _encoder_layer_kernel,
        num_heads=num_heads, d_k=d_k, eps=1e-6, block_b=block_b)

    return pl.pallas_call(
        kernel,
        out_shape=jax.ShapeDtypeStruct((B, S, D), x.dtype),
        grid_spec=pltpu.PrefetchScalarGridSpec(
            num_scalar_prefetch=0,
            grid=(B // block_b,),
            in_specs=[
                pl.BlockSpec((block_b, S, D), lambda b: (b, 0, 0)),   # x rows
                pl.BlockSpec((block_b, S, S), lambda b: (b, 0, 0)),   # mask rows
            ] + [full_block(w) for w in weights],
            out_specs=pl.BlockSpec((block_b, S, D), lambda b: (b, 0, 0)),
        ),
        compiler_params=pltpu.CompilerParams(
            dimension_semantics=("parallel",),
        ),
    )(x, mask_i8, *weights)


def init_params(key, d_model, d_ff):
    ks = jax.random.split(key, 10)

    def lin(k, fan_in, fan_out):
        kw, kb = jax.random.split(k)
        w = jax.random.normal(kw, (fan_in, fan_out), jnp.float32) / math.sqrt(fan_in)
        b = 0.1 * jax.random.normal(kb, (1, fan_out), jnp.float32)
        return w, b

    wq, bq = lin(ks[0], d_model, d_model)
    wk, bk = lin(ks[1], d_model, d_model)
    wv, bv = lin(ks[2], d_model, d_model)
    wo, bo = lin(ks[3], d_model, d_model)
    w1, b1 = lin(ks[4], d_model, d_ff)
    w2, b2 = lin(ks[5], d_ff, d_model)
    ln1_g = 1.0 + 0.1 * jax.random.normal(ks[6], (1, d_model), jnp.float32)
    ln1_b = 0.1 * jax.random.normal(ks[7], (1, d_model), jnp.float32)
    ln2_g = 1.0 + 0.1 * jax.random.normal(ks[8], (1, d_model), jnp.float32)
    ln2_b = 0.1 * jax.random.normal(ks[9], (1, d_model), jnp.float32)
    return dict(wq=wq, bq=bq, wk=wk, bk=bk, wv=wv, bv=bv, wo=wo, bo=bo,
                w1=w1, b1=b1, w2=w2, b2=b2,
                ln1_g=ln1_g, ln1_b=ln1_b, ln2_g=ln2_g, ln2_b=ln2_b)


def encoder_layer_ref(x, mask, p, *, num_heads):
    """Pure-JAX reference with matching bf16-at-the-dot math (inference dropout = identity)."""
    B, S, D = x.shape
    d_k = D // num_heads
    eps = 1e-6
    scale = 1.0 / math.sqrt(d_k)
    bf16 = jnp.bfloat16

    def layer_norm(v, g, b):
        mean = v.mean(-1, keepdims=True)
        var = jnp.sum((v - mean) ** 2, axis=-1, keepdims=True) / (D - 1)
        return g * (v - mean) / (jnp.sqrt(var) + eps) + b

    def dot(a, w):
        return jnp.dot(a.astype(bf16), w.astype(bf16),
                       preferred_element_type=jnp.float32)

    xn = layer_norm(x, p["ln1_g"], p["ln1_b"])
    q = (dot(xn, p["wq"]) + p["bq"]) * scale          # scale folded into q (== scores/sqrt(d_k))
    k = dot(xn, p["wk"]) + p["bk"]
    v = dot(xn, p["wv"]) + p["bv"]

    def split(t):
        return t.reshape(B, S, num_heads, d_k).transpose(0, 2, 1, 3)  # (B,H,S,dk)

    qh, kh, vh = split(q), split(k), split(v)
    scores = jnp.einsum("bhqd,bhkd->bhqk", qh.astype(bf16), kh.astype(bf16),
                        preferred_element_type=jnp.float32)
    scores = jnp.where(mask[:, None, :, :] == 0.0, -1e9, scores)
    m = jnp.max(scores, axis=-1, keepdims=True)
    e = jnp.exp(scores - m)
    p_attn = e / jnp.sum(e, axis=-1, keepdims=True)
    ctx = jnp.einsum("bhqk,bhkd->bhqd", p_attn.astype(bf16), vh.astype(bf16),
                     preferred_element_type=jnp.float32)
    ctx = ctx.transpose(0, 2, 1, 3).reshape(B, S, D)
    y = dot(ctx, p["wo"]) + p["bo"]
    x1 = x + y
    xn2 = layer_norm(x1, p["ln2_g"], p["ln2_b"])
    hidden = jax.nn.relu(dot(xn2, p["w1"]) + p["b1"])
    return x1 + dot(hidden, p["w2"]) + p["b2"]


if __name__ == "__main__":
    # Small shapes consistent with the module: batch=2, seq=8, hidden=32, heads=4.
    batch, seq, d_model, num_heads = 2, 8, 32, 4
    d_ff = 2 * d_model        # PositionwiseFeedForward: d_ff = hidden_dim * 2

    root = jax.random.PRNGKey(0)
    k_x, k_p = jax.random.split(root)
    x = jax.random.normal(k_x, (batch, seq, d_model), dtype=jnp.float32)

    # Attention mask (1 = attend, 0 = masked); batch 1 cannot attend to the
    # last two key positions, exercising the masked_fill path.
    mask = jnp.ones((batch, seq, seq), dtype=jnp.float32)
    mask = mask.at[1, :, seq - 2:].set(0.0)

    params = init_params(k_p, d_model, d_ff)

    out = encoder_layer_forward(x, mask, params, num_heads=num_heads, block_b=batch)
    out = jax.block_until_ready(out)

    ref = encoder_layer_ref(x, mask, params, num_heads=num_heads)
    assert out.shape == (batch, seq, d_model)
    max_err = float(jnp.max(jnp.abs(out - ref)))
    # bf16 dot inputs are mirrored in the reference; remaining divergence is the
    # EUP approx reciprocal (softmax / LayerNorm) and f32 accumulation order.
    assert jnp.allclose(out, ref, atol=2e-2, rtol=2e-2), (
        f"mismatch vs reference (max abs err {max_err})")

    print("KERNEL_OK")
</pallas_src>

<mosaic_0001>
module attributes {stable_mosaic.version = 11 : i64} {
  func.func @_encoder_layer_kernel(%arg0: i32, %arg1: memref<2x8x32xf32, #tpu.memory_space<vmem>>, %arg2: memref<2x8x8xi8, #tpu.memory_space<vmem>>, %arg3: memref<1x32xf32, #tpu.memory_space<vmem>>, %arg4: memref<1x32xf32, #tpu.memory_space<vmem>>, %arg5: memref<4x32x8xbf16, #tpu.memory_space<vmem>>, %arg6: memref<4x1x8xf32, #tpu.memory_space<vmem>>, %arg7: memref<4x32x8xbf16, #tpu.memory_space<vmem>>, %arg8: memref<4x1x8xf32, #tpu.memory_space<vmem>>, %arg9: memref<4x32x8xbf16, #tpu.memory_space<vmem>>, %arg10: memref<4x1x8xf32, #tpu.memory_space<vmem>>, %arg11: memref<4x8x32xbf16, #tpu.memory_space<vmem>>, %arg12: memref<1x32xf32, #tpu.memory_space<vmem>>, %arg13: memref<1x32xf32, #tpu.memory_space<vmem>>, %arg14: memref<1x32xf32, #tpu.memory_space<vmem>>, %arg15: memref<32x64xbf16, #tpu.memory_space<vmem>>, %arg16: memref<1x64xf32, #tpu.memory_space<vmem>>, %arg17: memref<64x32xbf16, #tpu.memory_space<vmem>>, %arg18: memref<1x32xf32, #tpu.memory_space<vmem>>, %arg19: memref<2x8x32xf32, #tpu.memory_space<vmem>>) attributes {dimension_semantics = [#tpu.dimension_semantics<parallel>], iteration_bounds = array<i64: 1>, scalar_prefetch = 0 : i64, scratch_operands = 0 : i64, tpu.core_type = #tpu.core_type<tc>, window_params = [{transform_indices = @transform_0, window_bounds = array<i64: 2, 8, 32>}, {transform_indices = @transform_1, window_bounds = array<i64: 2, 8, 8>}, {pipeline_mode = #tpu.pipeline_mode<synchronous>, transform_indices = @transform_2, window_bounds = array<i64: 1, 32>}, {pipeline_mode = #tpu.pipeline_mode<synchronous>, transform_indices = @transform_3, window_bounds = array<i64: 1, 32>}, {pipeline_mode = #tpu.pipeline_mode<synchronous>, transform_indices = @transform_4, window_bounds = array<i64: 4, 32, 8>}, {pipeline_mode = #tpu.pipeline_mode<synchronous>, transform_indices = @transform_5, window_bounds = array<i64: 4, 1, 8>}, {pipeline_mode = #tpu.pipeline_mode<synchronous>, transform_indices = @transform_6, window_bounds = array<i64: 4, 32, 8>}, {pipeline_mode = #tpu.pipeline_mode<synchronous>, transform_indices = @transform_7, window_bounds = array<i64: 4, 1, 8>}, {pipeline_mode = #tpu.pipeline_mode<synchronous>, transform_indices = @transform_8, window_bounds = array<i64: 4, 32, 8>}, {pipeline_mode = #tpu.pipeline_mode<synchronous>, transform_indices = @transform_9, window_bounds = array<i64: 4, 1, 8>}, {pipeline_mode = #tpu.pipeline_mode<synchronous>, transform_indices = @transform_10, window_bounds = array<i64: 4, 8, 32>}, {pipeline_mode = #tpu.pipeline_mode<synchronous>, transform_indices = @transform_11, window_bounds = array<i64: 1, 32>}, {pipeline_mode = #tpu.pipeline_mode<synchronous>, transform_indices = @transform_12, window_bounds = array<i64: 1, 32>}, {pipeline_mode = #tpu.pipeline_mode<synchronous>, transform_indices = @transform_13, window_bounds = array<i64: 1, 32>}, {pipeline_mode = #tpu.pipeline_mode<synchronous>, transform_indices = @transform_14, window_bounds = array<i64: 32, 64>}, {pipeline_mode = #tpu.pipeline_mode<synchronous>, transform_indices = @transform_15, window_bounds = array<i64: 1, 64>}, {pipeline_mode = #tpu.pipeline_mode<synchronous>, transform_indices = @transform_16, window_bounds = array<i64: 64, 32>}, {pipeline_mode = #tpu.pipeline_mode<synchronous>, transform_indices = @transform_17, window_bounds = array<i64: 1, 32>}, {transform_indices = @transform_18, window_bounds = array<i64: 2, 8, 32>}]} {
    %c0 = arith.constant 0 : index
    %c0_0 = arith.constant 0 : index
    %0 = vector.load %arg3[%c0, %c0_0] : memref<1x32xf32, #tpu.memory_space<vmem>>, vector<1x32xf32>
    %c0_1 = arith.constant 0 : index
    %c0_2 = arith.constant 0 : index
    %1 = vector.load %arg4[%c0_1, %c0_2] : memref<1x32xf32, #tpu.memory_space<vmem>>, vector<1x32xf32>
    %c0_3 = arith.constant 0 : index
    %c0_4 = arith.constant 0 : index
    %2 = vector.load %arg13[%c0_3, %c0_4] : memref<1x32xf32, #tpu.memory_space<vmem>>, vector<1x32xf32>
    %c0_5 = arith.constant 0 : index
    %c0_6 = arith.constant 0 : index
    %3 = vector.load %arg14[%c0_5, %c0_6] : memref<1x32xf32, #tpu.memory_space<vmem>>, vector<1x32xf32>
    %c0_7 = arith.constant 0 : index
    %c0_8 = arith.constant 0 : index
    %4 = vector.load %arg12[%c0_7, %c0_8] : memref<1x32xf32, #tpu.memory_space<vmem>>, vector<1x32xf32>
    %c0_9 = arith.constant 0 : index
    %c0_10 = arith.constant 0 : index
    %5 = vector.load %arg16[%c0_9, %c0_10] : memref<1x64xf32, #tpu.memory_space<vmem>>, vector<1x64xf32>
    %c0_11 = arith.constant 0 : index
    %c0_12 = arith.constant 0 : index
    %6 = vector.load %arg18[%c0_11, %c0_12] : memref<1x32xf32, #tpu.memory_space<vmem>>, vector<1x32xf32>
    %c0_13 = arith.constant 0 : index
    %c0_14 = arith.constant 0 : index
    %c0_15 = arith.constant 0 : index
    %7 = vector.load %arg1[%c0_13, %c0_14, %c0_15] : memref<2x8x32xf32, #tpu.memory_space<vmem>>, vector<1x8x32xf32>
    %8 = vector.shape_cast %7 : vector<1x8x32xf32> to vector<8x32xf32>
    %c0_16 = arith.constant 0 : index
    %c0_17 = arith.constant 0 : index
    %c0_18 = arith.constant 0 : index
    %9 = vector.load %arg2[%c0_16, %c0_17, %c0_18] : memref<2x8x8xi8, #tpu.memory_space<vmem>>, vector<1x8x8xi8>
    %10 = vector.shape_cast %9 : vector<1x8x8xi8> to vector<8x8xi8>
    %11 = arith.extsi %10 : vector<8x8xi8> to vector<8x8xi32>
    %c0_i32 = arith.constant 0 : i32
    %12 = vector.broadcast %c0_i32 : i32 to vector<8x8xi32>
    %13 = arith.cmpi eq, %11, %12 : vector<8x8xi32>
    %cst = arith.constant dense<0.000000e+00> : vector<8xf32>
    %14 = vector.multi_reduction <add>, %8, %cst [1] : vector<8x32xf32> to vector<8xf32>
    %15 = vector.shape_cast %14 : vector<8xf32> to vector<8x1xf32>
    %cst_19 = arith.constant 3.200000e+01 : f32
    %16 = vector.broadcast %cst_19 : f32 to vector<8x1xf32>
    %17 = arith.divf %15, %16 : vector<8x1xf32>
    %18 = vector.broadcast %17 : vector<8x1xf32> to vector<8x32xf32>
    %19 = arith.subf %8, %18 : vector<8x32xf32>
    %20 = arith.mulf %19, %19 : vector<8x32xf32>
    %cst_20 = arith.constant dense<0.000000e+00> : vector<8xf32>
    %21 = vector.multi_reduction <add>, %20, %cst_20 [1] : vector<8x32xf32> to vector<8xf32>
    %22 = vector.shape_cast %21 : vector<8xf32> to vector<8x1xf32>
    %cst_21 = arith.constant 3.100000e+01 : f32
    %23 = vector.broadcast %cst_21 : f32 to vector<8x1xf32>
    %24 = arith.divf %22, %23 : vector<8x1xf32>
    %25 = math.sqrt %24 : vector<8x1xf32>
    %cst_22 = arith.constant 9.99999997E-7 : f32
    %26 = vector.broadcast %cst_22 : f32 to vector<8x1xf32>
    %27 = arith.addf %25, %26 : vector<8x1xf32>
    %28 = tpu.reciprocal %27 {approx = true} : vector<8x1xf32> -> vector<8x1xf32>
    %29 = vector.broadcast %28 : vector<8x1xf32> to vector<8x32xf32>
    %30 = arith.mulf %19, %29 : vector<8x32xf32>
    %31 = vector.broadcast %0 : vector<1x32xf32> to vector<8x32xf32>
    %32 = arith.mulf %31, %30 : vector<8x32xf32>
    %33 = vector.broadcast %1 : vector<1x32xf32> to vector<8x32xf32>
    %34 = arith.addf %32, %33 : vector<8x32xf32>
    %35 = arith.truncf %34 : vector<8x32xf32> to vector<8x32xbf16>
    %cst_23 = arith.constant 0.000000e+00 : f32
    %36 = vector.broadcast %cst_23 : f32 to vector<8x32xf32>
    %c0_24 = arith.constant 0 : index
    %c0_25 = arith.constant 0 : index
    %c0_26 = arith.constant 0 : index
    %37 = vector.load %arg5[%c0_24, %c0_25, %c0_26] : memref<4x32x8xbf16, #tpu.memory_space<vmem>>, vector<1x32x8xbf16>
    %38 = vector.shape_cast %37 : vector<1x32x8xbf16> to vector<32x8xbf16>
    %cst_27 = arith.constant dense<0.000000e+00> : vector<8x8xf32>
    %39 = tpu.matmul %35, %38, %cst_27 {dimension_numbers = #tpu.dot_dimension_numbers<[1], [0], [0], [1], [0, 0, 1, 1], [], []>} : vector<8x32xbf16>, vector<32x8xbf16>, vector<8x8xf32> -> vector<8x8xf32>
    %c0_28 = arith.constant 0 : index
    %c0_29 = arith.constant 0 : index
    %c0_30 = arith.constant 0 : index
    %40 = vector.load %arg6[%c0_28, %c0_29, %c0_30] : memref<4x1x8xf32, #tpu.memory_space<vmem>>, vector<1x1x8xf32>
    %41 = vector.shape_cast %40 : vector<1x1x8xf32> to vector<1x8xf32>
    %42 = vector.broadcast %41 : vector<1x8xf32> to vector<8x8xf32>
    %43 = arith.addf %39, %42 : vector<8x8xf32>
    %cst_31 = arith.constant 0.353553385 : f32
    %44 = vector.broadcast %cst_31 : f32 to vector<8x8xf32>
    %45 = arith.mulf %43, %44 : vector<8x8xf32>
    %c0_32 = arith.constant 0 : index
    %c0_33 = arith.constant 0 : index
    %c0_34 = arith.constant 0 : index
    %46 = vector.load %arg7[%c0_32, %c0_33, %c0_34] : memref<4x32x8xbf16, #tpu.memory_space<vmem>>, vector<1x32x8xbf16>
    %47 = vector.shape_cast %46 : vector<1x32x8xbf16> to vector<32x8xbf16>
    %cst_35 = arith.constant dense<0.000000e+00> : vector<8x8xf32>
    %48 = tpu.matmul %35, %47, %cst_35 {dimension_numbers = #tpu.dot_dimension_numbers<[1], [0], [0], [1], [0, 0, 1, 1], [], []>} : vector<8x32xbf16>, vector<32x8xbf16>, vector<8x8xf32> -> vector<8x8xf32>
    %c0_36 = arith.constant 0 : index
    %c0_37 = arith.constant 0 : index
    %c0_38 = arith.constant 0 : index
    %49 = vector.load %arg8[%c0_36, %c0_37, %c0_38] : memref<4x1x8xf32, #tpu.memory_space<vmem>>, vector<1x1x8xf32>
    %50 = vector.shape_cast %49 : vector<1x1x8xf32> to vector<1x8xf32>
    %51 = vector.broadcast %50 : vector<1x8xf32> to vector<8x8xf32>
    %52 = arith.addf %48, %51 : vector<8x8xf32>
    %c0_39 = arith.constant 0 : index
    %c0_40 = arith.constant 0 : index
    %c0_41 = arith.constant 0 : index
    %53 = vector.load %arg9[%c0_39, %c0_40, %c0_41] : memref<4x32x8xbf16, #tpu.memory_space<vmem>>, vector<1x32x8xbf16>
    %54 = vector.shape_cast %53 : vector<1x32x8xbf16> to vector<32x8xbf16>
    %cst_42 = arith.constant dense<0.000000e+00> : vector<8x8xf32>
    %55 = tpu.matmul %35, %54, %cst_42 {dimension_numbers = #tpu.dot_dimension_numbers<[1], [0], [0], [1], [0, 0, 1, 1], [], []>} : vector<8x32xbf16>, vector<32x8xbf16>, vector<8x8xf32> -> vector<8x8xf32>
    %c0_43 = arith.constant 0 : index
    %c0_44 = arith.constant 0 : index
    %c0_45 = arith.constant 0 : index
    %56 = vector.load %arg10[%c0_43, %c0_44, %c0_45] : memref<4x1x8xf32, #tpu.memory_space<vmem>>, vector<1x1x8xf32>
    %57 = vector.shape_cast %56 : vector<1x1x8xf32> to vector<1x8xf32>
    %58 = vector.broadcast %57 : vector<1x8xf32> to vector<8x8xf32>
    %59 = arith.addf %55, %58 : vector<8x8xf32>
    %60 = arith.truncf %45 : vector<8x8xf32> to vector<8x8xbf16>
    %61 = arith.truncf %52 : vector<8x8xf32> to vector<8x8xbf16>
    %cst_46 = arith.constant dense<0.000000e+00> : vector<8x8xf32>
    %62 = tpu.matmul %60, %61, %cst_46 {dimension_numbers = #tpu.dot_dimension_numbers<[1], [1], [0], [0], [0, 0, 1, 0], [], []>} : vector<8x8xbf16>, vector<8x8xbf16>, vector<8x8xf32> -> vector<8x8xf32>
    %cst_47 = arith.constant -1.000000e+09 : f32
    %63 = vector.broadcast %cst_47 : f32 to vector<8x8xf32>
    %64 = arith.select %13, %63, %62 : vector<8x8xi1>, vector<8x8xf32>
    %cst_48 = arith.constant dense<0xFF800000> : vector<8xf32>
    %65 = vector.multi_reduction <maximumf>, %64, %cst_48 [1] : vector<8x8xf32> to vector<8xf32>
    %66 = vector.shape_cast %65 : vector<8xf32> to vector<8x1xf32>
    %67 = vector.broadcast %66 : vector<8x1xf32> to vector<8x8xf32>
    %68 = arith.subf %64, %67 : vector<8x8xf32>
    %69 = math.exp %68 : vector<8x8xf32>
    %cst_49 = arith.constant dense<0.000000e+00> : vector<8xf32>
    %70 = vector.multi_reduction <add>, %69, %cst_49 [1] : vector<8x8xf32> to vector<8xf32>
    %71 = vector.shape_cast %70 : vector<8xf32> to vector<8x1xf32>
    %72 = tpu.reciprocal %71 {approx = true} : vector<8x1xf32> -> vector<8x1xf32>
    %73 = vector.broadcast %72 : vector<8x1xf32> to vector<8x8xf32>
    %74 = arith.mulf %69, %73 : vector<8x8xf32>
    %75 = arith.truncf %74 : vector<8x8xf32> to vector<8x8xbf16>
    %76 = arith.truncf %59 : vector<8x8xf32> to vector<8x8xbf16>
    %cst_50 = arith.constant dense<0.000000e+00> : vector<8x8xf32>
    %77 = tpu.matmul %75, %76, %cst_50 {dimension_numbers = #tpu.dot_dimension_numbers<[1], [0], [0], [1], [0, 0, 1, 1], [], []>} : vector<8x8xbf16>, vector<8x8xbf16>, vector<8x8xf32> -> vector<8x8xf32>
    %78 = arith.truncf %77 : vector<8x8xf32> to vector<8x8xbf16>
    %c0_51 = arith.constant 0 : index
    %c0_52 = arith.constant 0 : index
    %c0_53 = arith.constant 0 : index
    %79 = vector.load %arg11[%c0_51, %c0_52, %c0_53] : memref<4x8x32xbf16, #tpu.memory_space<vmem>>, vector<1x8x32xbf16>
    %80 = vector.shape_cast %79 : vector<1x8x32xbf16> to vector<8x32xbf16>
    %cst_54 = arith.constant dense<0.000000e+00> : vector<8x32xf32>
    %81 = tpu.matmul %78, %80, %cst_54 {dimension_numbers = #tpu.dot_dimension_numbers<[1], [0], [0], [1], [0, 0, 1, 1], [], []>} : vector<8x8xbf16>, vector<8x32xbf16>, vector<8x32xf32> -> vector<8x32xf32>
    %82 = arith.addf %36, %81 : vector<8x32xf32>
    %c1 = arith.constant 1 : index
    %c0_55 = arith.constant 0 : index
    %c0_56 = arith.constant 0 : index
    %83 = vector.load %arg5[%c1, %c0_55, %c0_56] : memref<4x32x8xbf16, #tpu.memory_space<vmem>>, vector<1x32x8xbf16>
    %84 = vector.shape_cast %83 : vector<1x32x8xbf16> to vector<32x8xbf16>
    %cst_57 = arith.constant dense<0.000000e+00> : vector<8x8xf32>
    %85 = tpu.matmul %35, %84, %cst_57 {dimension_numbers = #tpu.dot_dimension_numbers<[1], [0], [0], [1], [0, 0, 1, 1], [], []>} : vector<8x32xbf16>, vector<32x8xbf16>, vector<8x8xf32> -> vector<8x8xf32>
    %c1_58 = arith.constant 1 : index
    %c0_59 = arith.constant 0 : index
    %c0_60 = arith.constant 0 : index
    %86 = vector.load %arg6[%c1_58, %c0_59, %c0_60] : memref<4x1x8xf32, #tpu.memory_space<vmem>>, vector<1x1x8xf32>
    %87 = vector.shape_cast %86 : vector<1x1x8xf32> to vector<1x8xf32>
    %88 = vector.broadcast %87 : vector<1x8xf32> to vector<8x8xf32>
    %89 = arith.addf %85, %88 : vector<8x8xf32>
    %cst_61 = arith.constant 0.353553385 : f32
    %90 = vector.broadcast %cst_61 : f32 to vector<8x8xf32>
    %91 = arith.mulf %89, %90 : vector<8x8xf32>
    %c1_62 = arith.constant 1 : index
    %c0_63 = arith.constant 0 : index
    %c0_64 = arith.constant 0 : index
    %92 = vector.load %arg7[%c1_62, %c0_63, %c0_64] : memref<4x32x8xbf16, #tpu.memory_space<vmem>>, vector<1x32x8xbf16>
    %93 = vector.shape_cast %92 : vector<1x32x8xbf16> to vector<32x8xbf16>
    %cst_65 = arith.constant dense<0.000000e+00> : vector<8x8xf32>
    %94 = tpu.matmul %35, %93, %cst_65 {dimension_numbers = #tpu.dot_dimension_numbers<[1], [0], [0], [1], [0, 0, 1, 1], [], []>} : vector<8x32xbf16>, vector<32x8xbf16>, vector<8x8xf32> -> vector<8x8xf32>
    %c1_66 = arith.constant 1 : index
    %c0_67 = arith.constant 0 : index
    %c0_68 = arith.constant 0 : index
    %95 = vector.load %arg8[%c1_66, %c0_67, %c0_68] : memref<4x1x8xf32, #tpu.memory_space<vmem>>, vector<1x1x8xf32>
    %96 = vector.shape_cast %95 : vector<1x1x8xf32> to vector<1x8xf32>
    %97 = vector.broadcast %96 : vector<1x8xf32> to vector<8x8xf32>
    %98 = arith.addf %94, %97 : vector<8x8xf32>
    %c1_69 = arith.constant 1 : index
    %c0_70 = arith.constant 0 : index
    %c0_71 = arith.constant 0 : index
    %99 = vector.load %arg9[%c1_69, %c0_70, %c0_71] : memref<4x32x8xbf16, #tpu.memory_space<vmem>>, vector<1x32x8xbf16>
    %100 = vector.shape_cast %99 : vector<1x32x8xbf16> to vector<32x8xbf16>
    %cst_72 = arith.constant dense<0.000000e+00> : vector<8x8xf32>
    %101 = tpu.matmul %35, %100, %cst_72 {dimension_numbers = #tpu.dot_dimension_numbers<[1], [0], [0], [1], [0, 0, 1, 1], [], []>} : vector<8x32xbf16>, vector<32x8xbf16>, vector<8x8xf32> -> vector<8x8xf32>
    %c1_73 = arith.constant 1 : index
    %c0_74 = arith.constant 0 : index
    %c0_75 = arith.constant 0 : index
    %102 = vector.load %arg10[%c1_73, %c0_74, %c0_75] : memref<4x1x8xf32, #tpu.memory_space<vmem>>, vector<1x1x8xf32>
    %103 = vector.shape_cast %102 : vector<1x1x8xf32> to vector<1x8xf32>
    %104 = vector.broadcast %103 : vector<1x8xf32> to vector<8x8xf32>
    %105 = arith.addf %101, %104 : vector<8x8xf32>
    %106 = arith.truncf %91 : vector<8x8xf32> to vector<8x8xbf16>
    %107 = arith.truncf %98 : vector<8x8xf32> to vector<8x8xbf16>
    %cst_76 = arith.constant dense<0.000000e+00> : vector<8x8xf32>
    %108 = tpu.matmul %106, %107, %cst_76 {dimension_numbers = #tpu.dot_dimension_numbers<[1], [1], [0], [0], [0, 0, 1, 0], [], []>} : vector<8x8xbf16>, vector<8x8xbf16>, vector<8x8xf32> -> vector<8x8xf32>
    %cst_77 = arith.constant -1.000000e+09 : f32
    %109 = vector.broadcast %cst_77 : f32 to vector<8x8xf32>
    %110 = arith.select %13, %109, %108 : vector<8x8xi1>, vector<8x8xf32>
    %cst_78 = arith.constant dense<0xFF800000> : vector<8xf32>
    %111 = vector.multi_reduction <maximumf>, %110, %cst_78 [1] : vector<8x8xf32> to vector<8xf32>
    %112 = vector.shape_cast %111 : vector<8xf32> to vector<8x1xf32>
    %113 = vector.broadcast %112 : vector<8x1xf32> to vector<8x8xf32>
    %114 = arith.subf %110, %113 : vector<8x8xf32>
    %115 = math.exp %114 : vector<8x8xf32>
    %cst_79 = arith.constant dense<0.000000e+00> : vector<8xf32>
    %116 = vector.multi_reduction <add>, %115, %cst_79 [1] : vector<8x8xf32> to vector<8xf32>
    %117 = vector.shape_cast %116 : vector<8xf32> to vector<8x1xf32>
    %118 = tpu.reciprocal %117 {approx = true} : vector<8x1xf32> -> vector<8x1xf32>
    %119 = vector.broadcast %118 : vector<8x1xf32> to vector<8x8xf32>
    %120 = arith.mulf %115, %119 : vector<8x8xf32>
    %121 = arith.truncf %120 : vector<8x8xf32> to vector<8x8xbf16>
    %122 = arith.truncf %105 : vector<8x8xf32> to vector<8x8xbf16>
    %cst_80 = arith.constant dense<0.000000e+00> : vector<8x8xf32>
    %123 = tpu.matmul %121, %122, %cst_80 {dimension_numbers = #tpu.dot_dimension_numbers<[1], [0], [0], [1], [0, 0, 1, 1], [], []>} : vector<8x8xbf16>, vector<8x8xbf16>, vector<8x8xf32> -> vector<8x8xf32>
    %124 = arith.truncf %123 : vector<8x8xf32> to vector<8x8xbf16>
    %c1_81 = arith.constant 1 : index
    %c0_82 = arith.constant 0 : index
    %c0_83 = arith.constant 0 : index
    %125 = vector.load %arg11[%c1_81, %c0_82, %c0_83] : memref<4x8x32xbf16, #tpu.memory_space<vmem>>, vector<1x8x32xbf16>
    %126 = vector.shape_cast %125 : vector<1x8x32xbf16> to vector<8x32xbf16>
    %cst_84 = arith.constant dense<0.000000e+00> : vector<8x32xf32>
    %127 = tpu.matmul %124, %126, %cst_84 {dimension_numbers = #tpu.dot_dimension_numbers<[1], [0], [0], [1], [0, 0, 1, 1], [], []>} : vector<8x8xbf16>, vector<8x32xbf16>, vector<8x32xf32> -> vector<8x32xf32>
    %128 = arith.addf %82, %127 : vector<8x32xf32>
    %c2 = arith.constant 2 : index
    %c0_85 = arith.constant 0 : index
    %c0_86 = arith.constant 0 : index
    %129 = vector.load %arg5[%c2, %c0_85, %c0_86] : memref<4x32x8xbf16, #tpu.memory_space<vmem>>, vector<1x32x8xbf16>
    %130 = vector.shape_cast %129 : vector<1x32x8xbf16> to vector<32x8xbf16>
    %cst_87 = arith.constant dense<0.000000e+00> : vector<8x8xf32>
    %131 = tpu.matmul %35, %130, %cst_87 {dimension_numbers = #tpu.dot_dimension_numbers<[1], [0], [0], [1], [0, 0, 1, 1], [], []>} : vector<8x32xbf16>, vector<32x8xbf16>, vector<8x8xf32> -> vector<8x8xf32>
    %c2_88 = arith.constant 2 : index
    %c0_89 = arith.constant 0 : index
    %c0_90 = arith.constant 0 : index
    %132 = vector.load %arg6[%c2_88, %c0_89, %c0_90] : memref<4x1x8xf32, #tpu.memory_space<vmem>>, vector<1x1x8xf32>
    %133 = vector.shape_cast %132 : vector<1x1x8xf32> to vector<1x8xf32>
    %134 = vector.broadcast %133 : vector<1x8xf32> to vector<8x8xf32>
    %135 = arith.addf %131, %134 : vector<8x8xf32>
    %cst_91 = arith.constant 0.353553385 : f32
    %136 = vector.broadcast %cst_91 : f32 to vector<8x8xf32>
    %137 = arith.mulf %135, %136 : vector<8x8xf32>
    %c2_92 = arith.constant 2 : index
    %c0_93 = arith.constant 0 : index
    %c0_94 = arith.constant 0 : index
    %138 = vector.load %arg7[%c2_92, %c0_93, %c0_94] : memref<4x32x8xbf16, #tpu.memory_space<vmem>>, vector<1x32x8xbf16>
    %139 = vector.shape_cast %138 : vector<1x32x8xbf16> to vector<32x8xbf16>
    %cst_95 = arith.constant dense<0.000000e+00> : vector<8x8xf32>
    %140 = tpu.matmul %35, %139, %cst_95 {dimension_numbers = #tpu.dot_dimension_numbers<[1], [0], [0], [1], [0, 0, 1, 1], [], []>} : vector<8x32xbf16>, vector<32x8xbf16>, vector<8x8xf32> -> vector<8x8xf32>
    %c2_96 = arith.constant 2 : index
    %c0_97 = arith.constant 0 : index
    %c0_98 = arith.constant 0 : index
    %141 = vector.load %arg8[%c2_96, %c0_97, %c0_98] : memref<4x1x8xf32, #tpu.memory_space<vmem>>, vector<1x1x8xf32>
    %142 = vector.shape_cast %141 : vector<1x1x8xf32> to vector<1x8xf32>
    %143 = vector.broadcast %142 : vector<1x8xf32> to vector<8x8xf32>
    %144 = arith.addf %140, %143 : vector<8x8xf32>
    %c2_99 = arith.constant 2 : index
    %c0_100 = arith.constant 0 : index
    %c0_101 = arith.constant 0 : index
    %145 = vector.load %arg9[%c2_99, %c0_100, %c0_101] : memref<4x32x8xbf16, #tpu.memory_space<vmem>>, vector<1x32x8xbf16>
    %146 = vector.shape_cast %145 : vector<1x32x8xbf16> to vector<32x8xbf16>
    %cst_102 = arith.constant dense<0.000000e+00> : vector<8x8xf32>
    %147 = tpu.matmul %35, %146, %cst_102 {dimension_numbers = #tpu.dot_dimension_numbers<[1], [0], [0], [1], [0, 0, 1, 1], [], []>} : vector<8x32xbf16>, vector<32x8xbf16>, vector<8x8xf32> -> vector<8x8xf32>
    %c2_103 = arith.constant 2 : index
    %c0_104 = arith.constant 0 : index
    %c0_105 = arith.constant 0 : index
    %148 = vector.load %arg10[%c2_103, %c0_104, %c0_105] : memref<4x1x8xf32, #tpu.memory_space<vmem>>, vector<1x1x8xf32>
    %149 = vector.shape_cast %148 : vector<1x1x8xf32> to vector<1x8xf32>
    %150 = vector.broadcast %149 : vector<1x8xf32> to vector<8x8xf32>
    %151 = arith.addf %147, %150 : vector<8x8xf32>
    %152 = arith.truncf %137 : vector<8x8xf32> to vector<8x8xbf16>
    %153 = arith.truncf %144 : vector<8x8xf32> to vector<8x8xbf16>
    %cst_106 = arith.constant dense<0.000000e+00> : vector<8x8xf32>
    %154 = tpu.matmul %152, %153, %cst_106 {dimension_numbers = #tpu.dot_dimension_numbers<[1], [1], [0], [0], [0, 0, 1, 0], [], []>} : vector<8x8xbf16>, vector<8x8xbf16>, vector<8x8xf32> -> vector<8x8xf32>
    %cst_107 = arith.constant -1.000000e+09 : f32
    %155 = vector.broadcast %cst_107 : f32 to vector<8x8xf32>
    %156 = arith.select %13, %155, %154 : vector<8x8xi1>, vector<8x8xf32>
    %cst_108 = arith.constant dense<0xFF800000> : vector<8xf32>
    %157 = vector.multi_reduction <maximumf>, %156, %cst_108 [1] : vector<8x8xf32> to vector<8xf32>
    %158 = vector.shape_cast %157 : vector<8xf32> to vector<8x1xf32>
    %159 = vector.broadcast %158 : vector<8x1xf32> to vector<8x8xf32>
    %160 = arith.subf %156, %159 : vector<8x8xf32>
    %161 = math.exp %160 : vector<8x8xf32>
    %cst_109 = arith.constant dense<0.000000e+00> : vector<8xf32>
    %162 = vector.multi_reduction <add>, %161, %cst_109 [1] : vector<8x8xf32> to vector<8xf32>
    %163 = vector.shape_cast %162 : vector<8xf32> to vector<8x1xf32>
    %164 = tpu.reciprocal %163 {approx = true} : vector<8x1xf32> -> vector<8x1xf32>
    %165 = vector.broadcast %164 : vector<8x1xf32> to vector<8x8xf32>
    %166 = arith.mulf %161, %165 : vector<8x8xf32>
    %167 = arith.truncf %166 : vector<8x8xf32> to vector<8x8xbf16>
    %168 = arith.truncf %151 : vector<8x8xf32> to vector<8x8xbf16>
    %cst_110 = arith.constant dense<0.000000e+00> : vector<8x8xf32>
    %169 = tpu.matmul %167, %168, %cst_110 {dimension_numbers = #tpu.dot_dimension_numbers<[1], [0], [0], [1], [0, 0, 1, 1], [], []>} : vector<8x8xbf16>, vector<8x8xbf16>, vector<8x8xf32> -> vector<8x8xf32>
    %170 = arith.truncf %169 : vector<8x8xf32> to vector<8x8xbf16>
    %c2_111 = arith.constant 2 : index
    %c0_112 = arith.constant 0 : index
    %c0_113 = arith.constant 0 : index
    %171 = vector.load %arg11[%c2_111, %c0_112, %c0_113] : memref<4x8x32xbf16, #tpu.memory_space<vmem>>, vector<1x8x32xbf16>
    %172 = vector.shape_cast %171 : vector<1x8x32xbf16> to vector<8x32xbf16>
    %cst_114 = arith.constant dense<0.000000e+00> : vector<8x32xf32>
    %173 = tpu.matmul %170, %172, %cst_114 {dimension_numbers = #tpu.dot_dimension_numbers<[1], [0], [0], [1], [0, 0, 1, 1], [], []>} : vector<8x8xbf16>, vector<8x32xbf16>, vector<8x32xf32> -> vector<8x32xf32>
    %174 = arith.addf %128, %173 : vector<8x32xf32>
    %c3 = arith.constant 3 : index
    %c0_115 = arith.constant 0 : index
    %c0_116 = arith.constant 0 : index
    %175 = vector.load %arg5[%c3, %c0_115, %c0_116] : memref<4x32x8xbf16, #tpu.memory_space<vmem>>, vector<1x32x8xbf16>
    %176 = vector.shape_cast %175 : vector<1x32x8xbf16> to vector<32x8xbf16>
    %cst_117 = arith.constant dense<0.000000e+00> : vector<8x8xf32>
    %177 = tpu.matmul %35, %176, %cst_117 {dimension_numbers = #tpu.dot_dimension_numbers<[1], [0], [0], [1], [0, 0, 1, 1], [], []>} : vector<8x32xbf16>, vector<32x8xbf16>, vector<8x8xf32> -> vector<8x8xf32>
    %c3_118 = arith.constant 3 : index
    %c0_119 = arith.constant 0 : index
    %c0_120 = arith.constant 0 : index
    %178 = vector.load %arg6[%c3_118, %c0_119, %c0_120] : memref<4x1x8xf32, #tpu.memory_space<vmem>>, vector<1x1x8xf32>
    %179 = vector.shape_cast %178 : vector<1x1x8xf32> to vector<1x8xf32>
    %180 = vector.broadcast %179 : vector<1x8xf32> to vector<8x8xf32>
    %181 = arith.addf %177, %180 : vector<8x8xf32>
    %cst_121 = arith.constant 0.353553385 : f32
    %182 = vector.broadcast %cst_121 : f32 to vector<8x8xf32>
    %183 = arith.mulf %181, %182 : vector<8x8xf32>
    %c3_122 = arith.constant 3 : index
    %c0_123 = arith.constant 0 : index
    %c0_124 = arith.constant 0 : index
    %184 = vector.load %arg7[%c3_122, %c0_123, %c0_124] : memref<4x32x8xbf16, #tpu.memory_space<vmem>>, vector<1x32x8xbf16>
    %185 = vector.shape_cast %184 : vector<1x32x8xbf16> to vector<32x8xbf16>
    %cst_125 = arith.constant dense<0.000000e+00> : vector<8x8xf32>
    %186 = tpu.matmul %35, %185, %cst_125 {dimension_numbers = #tpu.dot_dimension_numbers<[1], [0], [0], [1], [0, 0, 1, 1], [], []>} : vector<8x32xbf16>, vector<32x8xbf16>, vector<8x8xf32> -> vector<8x8xf32>
    %c3_126 = arith.constant 3 : index
    %c0_127 = arith.constant 0 : index
    %c0_128 = arith.constant 0 : index
    %187 = vector.load %arg8[%c3_126, %c0_127, %c0_128] : memref<4x1x8xf32, #tpu.memory_space<vmem>>, vector<1x1x8xf32>
    %188 = vector.shape_cast %187 : vector<1x1x8xf32> to vector<1x8xf32>
    %189 = vector.broadcast %188 : vector<1x8xf32> to vector<8x8xf32>
    %190 = arith.addf %186, %189 : vector<8x8xf32>
    %c3_129 = arith.constant 3 : index
    %c0_130 = arith.constant 0 : index
    %c0_131 = arith.constant 0 : index
    %191 = vector.load %arg9[%c3_129, %c0_130, %c0_131] : memref<4x32x8xbf16, #tpu.memory_space<vmem>>, vector<1x32x8xbf16>
    %192 = vector.shape_cast %191 : vector<1x32x8xbf16> to vector<32x8xbf16>
    %cst_132 = arith.constant dense<0.000000e+00> : vector<8x8xf32>
    %193 = tpu.matmul %35, %192, %cst_132 {dimension_numbers = #tpu.dot_dimension_numbers<[1], [0], [0], [1], [0, 0, 1, 1], [], []>} : vector<8x32xbf16>, vector<32x8xbf16>, vector<8x8xf32> -> vector<8x8xf32>
    %c3_133 = arith.constant 3 : index
    %c0_134 = arith.constant 0 : index
    %c0_135 = arith.constant 0 : index
    %194 = vector.load %arg10[%c3_133, %c0_134, %c0_135] : memref<4x1x8xf32, #tpu.memory_space<vmem>>, vector<1x1x8xf32>
    %195 = vector.shape_cast %194 : vector<1x1x8xf32> to vector<1x8xf32>
    %196 = vector.broadcast %195 : vector<1x8xf32> to vector<8x8xf32>
    %197 = arith.addf %193, %196 : vector<8x8xf32>
    %198 = arith.truncf %183 : vector<8x8xf32> to vector<8x8xbf16>
    %199 = arith.truncf %190 : vector<8x8xf32> to vector<8x8xbf16>
    %cst_136 = arith.constant dense<0.000000e+00> : vector<8x8xf32>
    %200 = tpu.matmul %198, %199, %cst_136 {dimension_numbers = #tpu.dot_dimension_numbers<[1], [1], [0], [0], [0, 0, 1, 0], [], []>} : vector<8x8xbf16>, vector<8x8xbf16>, vector<8x8xf32> -> vector<8x8xf32>
    %cst_137 = arith.constant -1.000000e+09 : f32
    %201 = vector.broadcast %cst_137 : f32 to vector<8x8xf32>
    %202 = arith.select %13, %201, %200 : vector<8x8xi1>, vector<8x8xf32>
    %cst_138 = arith.constant dense<0xFF800000> : vector<8xf32>
    %203 = vector.multi_reduction <maximumf>, %202, %cst_138 [1] : vector<8x8xf32> to vector<8xf32>
    %204 = vector.shape_cast %203 : vector<8xf32> to vector<8x1xf32>
    %205 = vector.broadcast %204 : vector<8x1xf32> to vector<8x8xf32>
    %206 = arith.subf %202, %205 : vector<8x8xf32>
    %207 = math.exp %206 : vector<8x8xf32>
    %cst_139 = arith.constant dense<0.000000e+00> : vector<8xf32>
    %208 = vector.multi_reduction <add>, %207, %cst_139 [1] : vector<8x8xf32> to vector<8xf32>
    %209 = vector.shape_cast %208 : vector<8xf32> to vector<8x1xf32>
    %210 = tpu.reciprocal %209 {approx = true} : vector<8x1xf32> -> vector<8x1xf32>
    %211 = vector.broadcast %210 : vector<8x1xf32> to vector<8x8xf32>
    %212 = arith.mulf %207, %211 : vector<8x8xf32>
    %213 = arith.truncf %212 : vector<8x8xf32> to vector<8x8xbf16>
    %214 = arith.truncf %197 : vector<8x8xf32> to vector<8x8xbf16>
    %cst_140 = arith.constant dense<0.000000e+00> : vector<8x8xf32>
    %215 = tpu.matmul %213, %214, %cst_140 {dimension_numbers = #tpu.dot_dimension_numbers<[1], [0], [0], [1], [0, 0, 1, 1], [], []>} : vector<8x8xbf16>, vector<8x8xbf16>, vector<8x8xf32> -> vector<8x8xf32>
    %216 = arith.truncf %215 : vector<8x8xf32> to vector<8x8xbf16>
    %c3_141 = arith.constant 3 : index
    %c0_142 = arith.constant 0 : index
    %c0_143 = arith.constant 0 : index
    %217 = vector.load %arg11[%c3_141, %c0_142, %c0_143] : memref<4x8x32xbf16, #tpu.memory_space<vmem>>, vector<1x8x32xbf16>
    %218 = vector.shape_cast %217 : vector<1x8x32xbf16> to vector<8x32xbf16>
    %cst_144 = arith.constant dense<0.000000e+00> : vector<8x32xf32>
    %219 = tpu.matmul %216, %218, %cst_144 {dimension_numbers = #tpu.dot_dimension_numbers<[1], [0], [0], [1], [0, 0, 1, 1], [], []>} : vector<8x8xbf16>, vector<8x32xbf16>, vector<8x32xf32> -> vector<8x32xf32>
    %220 = arith.addf %174, %219 : vector<8x32xf32>
    %221 = vector.broadcast %4 : vector<1x32xf32> to vector<8x32xf32>
    %222 = arith.addf %220, %221 : vector<8x32xf32>
    %223 = arith.addf %8, %222 : vector<8x32xf32>
    %cst_145 = arith.constant dense<0.000000e+00> : vector<8xf32>
    %224 = vector.multi_reduction <add>, %223, %cst_145 [1] : vector<8x32xf32> to vector<8xf32>
    %225 = vector.shape_cast %224 : vector<8xf32> to vector<8x1xf32>
    %cst_146 = arith.constant 3.200000e+01 : f32
    %226 = vector.broadcast %cst_146 : f32 to vector<8x1xf32>
    %227 = arith.divf %225, %226 : vector<8x1xf32>
    %228 = vector.broadcast %227 : vector<8x1xf32> to vector<8x32xf32>
    %229 = arith.subf %223, %228 : vector<8x32xf32>
    %230 = arith.mulf %229, %229 : vector<8x32xf32>
    %cst_147 = arith.constant dense<0.000000e+00> : vector<8xf32>
    %231 = vector.multi_reduction <add>, %230, %cst_147 [1] : vector<8x32xf32> to vector<8xf32>
    %232 = vector.shape_cast %231 : vector<8xf32> to vector<8x1xf32>
    %cst_148 = arith.constant 3.100000e+01 : f32
    %233 = vector.broadcast %cst_148 : f32 to vector<8x1xf32>
    %234 = arith.divf %232, %233 : vector<8x1xf32>
    %235 = math.sqrt %234 : vector<8x1xf32>
    %cst_149 = arith.constant 9.99999997E-7 : f32
    %236 = vector.broadcast %cst_149 : f32 to vector<8x1xf32>
    %237 = arith.addf %235, %236 : vector<8x1xf32>
    %238 = tpu.reciprocal %237 {approx = true} : vector<8x1xf32> -> vector<8x1xf32>
    %239 = vector.broadcast %238 : vector<8x1xf32> to vector<8x32xf32>
    %240 = arith.mulf %229, %239 : vector<8x32xf32>
    %241 = vector.broadcast %2 : vector<1x32xf32> to vector<8x32xf32>
    %242 = arith.mulf %241, %240 : vector<8x32xf32>
    %243 = vector.broadcast %3 : vector<1x32xf32> to vector<8x32xf32>
    %244 = arith.addf %242, %243 : vector<8x32xf32>
    %245 = arith.truncf %244 : vector<8x32xf32> to vector<8x32xbf16>
    %c0_150 = arith.constant 0 : index
    %c0_151 = arith.constant 0 : index
    %246 = vector.load %arg15[%c0_150, %c0_151] : memref<32x64xbf16, #tpu.memory_space<vmem>>, vector<32x64xbf16>
    %cst_152 = arith.constant dense<0.000000e+00> : vector<8x64xf32>
    %247 = tpu.matmul %245, %246, %cst_152 {dimension_numbers = #tpu.dot_dimension_numbers<[1], [0], [0], [1], [0, 0, 1, 1], [], []>} : vector<8x32xbf16>, vector<32x64xbf16>, vector<8x64xf32> -> vector<8x64xf32>
    %248 = vector.broadcast %5 : vector<1x64xf32> to vector<8x64xf32>
    %249 = arith.addf %247, %248 : vector<8x64xf32>
    %cst_153 = arith.constant 0.000000e+00 : f32
    %250 = vector.broadcast %cst_153 : f32 to vector<8x64xf32>
    %251 = arith.maximumf %249, %250 : vector<8x64xf32>
    %252 = arith.truncf %251 : vector<8x64xf32> to vector<8x64xbf16>
    %c0_154 = arith.constant 0 : index
    %c0_155 = arith.constant 0 : index
    %253 = vector.load %arg17[%c0_154, %c0_155] : memref<64x32xbf16, #tpu.memory_space<vmem>>, vector<64x32xbf16>
    %cst_156 = arith.constant dense<0.000000e+00> : vector<8x32xf32>
    %254 = tpu.matmul %252, %253, %cst_156 {dimension_numbers = #tpu.dot_dimension_numbers<[1], [0], [0], [1], [0, 0, 1, 1], [], []>} : vector<8x64xbf16>, vector<64x32xbf16>, vector<8x32xf32> -> vector<8x32xf32>
    %255 = vector.broadcast %6 : vector<1x32xf32> to vector<8x32xf32>
    %256 = arith.addf %254, %255 : vector<8x32xf32>
    %257 = arith.addf %223, %256 : vector<8x32xf32>
    %c0_157 = arith.constant 0 : index
    %c0_158 = arith.constant 0 : index
    %c0_159 = arith.constant 0 : index
    %258 = vector.load %arg19[%c0_157, %c0_158, %c0_159] : memref<2x8x32xf32, #tpu.memory_space<vmem>>, vector<1x8x32xf32>
    %259 = vector.shape_cast %258 : vector<1x8x32xf32> to vector<8x32xf32>
    %260 = vector.shape_cast %257 : vector<8x32xf32> to vector<1x8x32xf32>
    tpu.vector_store %arg19[%c0_157, %c0_158, %c0_159], %260 {strides = array<i32>} : memref<2x8x32xf32, #tpu.memory_space<vmem>>, vector<1x8x32xf32>,
    %c1_160 = arith.constant 1 : index
    %c0_161 = arith.constant 0 : index
    %c0_162 = arith.constant 0 : index
    %261 = vector.load %arg1[%c1_160, %c0_161, %c0_162] : memref<2x8x32xf32, #tpu.memory_space<vmem>>, vector<1x8x32xf32>
    %262 = vector.shape_cast %261 : vector<1x8x32xf32> to vector<8x32xf32>
    %c1_163 = arith.constant 1 : index
    %c0_164 = arith.constant 0 : index
    %c0_165 = arith.constant 0 : index
    %263 = vector.load %arg2[%c1_163, %c0_164, %c0_165] : memref<2x8x8xi8, #tpu.memory_space<vmem>>, vector<1x8x8xi8>
    %264 = vector.shape_cast %263 : vector<1x8x8xi8> to vector<8x8xi8>
    %265 = arith.extsi %264 : vector<8x8xi8> to vector<8x8xi32>
    %c0_i32_166 = arith.constant 0 : i32
    %266 = vector.broadcast %c0_i32_166 : i32 to vector<8x8xi32>
    %267 = arith.cmpi eq, %265, %266 : vector<8x8xi32>
    %cst_167 = arith.constant dense<0.000000e+00> : vector<8xf32>
    %268 = vector.multi_reduction <add>, %262, %cst_167 [1] : vector<8x32xf32> to vector<8xf32>
    %269 = vector.shape_cast %268 : vector<8xf32> to vector<8x1xf32>
    %cst_168 = arith.constant 3.200000e+01 : f32
    %270 = vector.broadcast %cst_168 : f32 to vector<8x1xf32>
    %271 = arith.divf %269, %270 : vector<8x1xf32>
    %272 = vector.broadcast %271 : vector<8x1xf32> to vector<8x32xf32>
    %273 = arith.subf %262, %272 : vector<8x32xf32>
    %274 = arith.mulf %273, %273 : vector<8x32xf32>
    %cst_169 = arith.constant dense<0.000000e+00> : vector<8xf32>
    %275 = vector.multi_reduction <add>, %274, %cst_169 [1] : vector<8x32xf32> to vector<8xf32>
    %276 = vector.shape_cast %275 : vector<8xf32> to vector<8x1xf32>
    %cst_170 = arith.constant 3.100000e+01 : f32
    %277 = vector.broadcast %cst_170 : f32 to vector<8x1xf32>
    %278 = arith.divf %276, %277 : vector<8x1xf32>
    %279 = math.sqrt %278 : vector<8x1xf32>
    %cst_171 = arith.constant 9.99999997E-7 : f32
    %280 = vector.broadcast %cst_171 : f32 to vector<8x1xf32>
    %281 = arith.addf %279, %280 : vector<8x1xf32>
    %282 = tpu.reciprocal %281 {approx = true} : vector<8x1xf32> -> vector<8x1xf32>
    %283 = vector.broadcast %282 : vector<8x1xf32> to vector<8x32xf32>
    %284 = arith.mulf %273, %283 : vector<8x32xf32>
    %285 = vector.broadcast %0 : vector<1x32xf32> to vector<8x32xf32>
    %286 = arith.mulf %285, %284 : vector<8x32xf32>
    %287 = vector.broadcast %1 : vector<1x32xf32> to vector<8x32xf32>
    %288 = arith.addf %286, %287 : vector<8x32xf32>
    %289 = arith.truncf %288 : vector<8x32xf32> to vector<8x32xbf16>
    %cst_172 = arith.constant 0.000000e+00 : f32
    %290 = vector.broadcast %cst_172 : f32 to vector<8x32xf32>
    %c0_173 = arith.constant 0 : index
    %c0_174 = arith.constant 0 : index
    %c0_175 = arith.constant 0 : index
    %291 = vector.load %arg5[%c0_173, %c0_174, %c0_175] : memref<4x32x8xbf16, #tpu.memory_space<vmem>>, vector<1x32x8xbf16>
    %292 = vector.shape_cast %291 : vector<1x32x8xbf16> to vector<32x8xbf16>
    %cst_176 = arith.constant dense<0.000000e+00> : vector<8x8xf32>
    %293 = tpu.matmul %289, %292, %cst_176 {dimension_numbers = #tpu.dot_dimension_numbers<[1], [0], [0], [1], [0, 0, 1, 1], [], []>} : vector<8x32xbf16>, vector<32x8xbf16>, vector<8x8xf32> -> vector<8x8xf32>
    %c0_177 = arith.constant 0 : index
    %c0_178 = arith.constant 0 : index
    %c0_179 = arith.constant 0 : index
    %294 = vector.load %arg6[%c0_177, %c0_178, %c0_179] : memref<4x1x8xf32, #tpu.memory_space<vmem>>, vector<1x1x8xf32>
    %295 = vector.shape_cast %294 : vector<1x1x8xf32> to vector<1x8xf32>
    %296 = vector.broadcast %295 : vector<1x8xf32> to vector<8x8xf32>
    %297 = arith.addf %293, %296 : vector<8x8xf32>
    %cst_180 = arith.constant 0.353553385 : f32
    %298 = vector.broadcast %cst_180 : f32 to vector<8x8xf32>
    %299 = arith.mulf %297, %298 : vector<8x8xf32>
    %c0_181 = arith.constant 0 : index
    %c0_182 = arith.constant 0 : index
    %c0_183 = arith.constant 0 : index
    %300 = vector.load %arg7[%c0_181, %c0_182, %c0_183] : memref<4x32x8xbf16, #tpu.memory_space<vmem>>, vector<1x32x8xbf16>
    %301 = vector.shape_cast %300 : vector<1x32x8xbf16> to vector<32x8xbf16>
    %cst_184 = arith.constant dense<0.000000e+00> : vector<8x8xf32>
    %302 = tpu.matmul %289, %301, %cst_184 {dimension_numbers = #tpu.dot_dimension_numbers<[1], [0], [0], [1], [0, 0, 1, 1], [], []>} : vector<8x32xbf16>, vector<32x8xbf16>, vector<8x8xf32> -> vector<8x8xf32>
    %c0_185 = arith.constant 0 : index
    %c0_186 = arith.constant 0 : index
    %c0_187 = arith.constant 0 : index
    %303 = vector.load %arg8[%c0_185, %c0_186, %c0_187] : memref<4x1x8xf32, #tpu.memory_space<vmem>>, vector<1x1x8xf32>
    %304 = vector.shape_cast %303 : vector<1x1x8xf32> to vector<1x8xf32>
    %305 = vector.broadcast %304 : vector<1x8xf32> to vector<8x8xf32>
    %306 = arith.addf %302, %305 : vector<8x8xf32>
    %c0_188 = arith.constant 0 : index
    %c0_189 = arith.constant 0 : index
    %c0_190 = arith.constant 0 : index
    %307 = vector.load %arg9[%c0_188, %c0_189, %c0_190] : memref<4x32x8xbf16, #tpu.memory_space<vmem>>, vector<1x32x8xbf16>
    %308 = vector.shape_cast %307 : vector<1x32x8xbf16> to vector<32x8xbf16>
    %cst_191 = arith.constant dense<0.000000e+00> : vector<8x8xf32>
    %309 = tpu.matmul %289, %308, %cst_191 {dimension_numbers = #tpu.dot_dimension_numbers<[1], [0], [0], [1], [0, 0, 1, 1], [], []>} : vector<8x32xbf16>, vector<32x8xbf16>, vector<8x8xf32> -> vector<8x8xf32>
    %c0_192 = arith.constant 0 : index
    %c0_193 = arith.constant 0 : index
    %c0_194 = arith.constant 0 : index
    %310 = vector.load %arg10[%c0_192, %c0_193, %c0_194] : memref<4x1x8xf32, #tpu.memory_space<vmem>>, vector<1x1x8xf32>
    %311 = vector.shape_cast %310 : vector<1x1x8xf32> to vector<1x8xf32>
    %312 = vector.broadcast %311 : vector<1x8xf32> to vector<8x8xf32>
    %313 = arith.addf %309, %312 : vector<8x8xf32>
    %314 = arith.truncf %299 : vector<8x8xf32> to vector<8x8xbf16>
    %315 = arith.truncf %306 : vector<8x8xf32> to vector<8x8xbf16>
    %cst_195 = arith.constant dense<0.000000e+00> : vector<8x8xf32>
    %316 = tpu.matmul %314, %315, %cst_195 {dimension_numbers = #tpu.dot_dimension_numbers<[1], [1], [0], [0], [0, 0, 1, 0], [], []>} : vector<8x8xbf16>, vector<8x8xbf16>, vector<8x8xf32> -> vector<8x8xf32>
    %cst_196 = arith.constant -1.000000e+09 : f32
    %317 = vector.broadcast %cst_196 : f32 to vector<8x8xf32>
    %318 = arith.select %267, %317, %316 : vector<8x8xi1>, vector<8x8xf32>
    %cst_197 = arith.constant dense<0xFF800000> : vector<8xf32>
    %319 = vector.multi_reduction <maximumf>, %318, %cst_197 [1] : vector<8x8xf32> to vector<8xf32>
    %320 = vector.shape_cast %319 : vector<8xf32> to vector<8x1xf32>
    %321 = vector.broadcast %320 : vector<8x1xf32> to vector<8x8xf32>
    %322 = arith.subf %318, %321 : vector<8x8xf32>
    %323 = math.exp %322 : vector<8x8xf32>
    %cst_198 = arith.constant dense<0.000000e+00> : vector<8xf32>
    %324 = vector.multi_reduction <add>, %323, %cst_198 [1] : vector<8x8xf32> to vector<8xf32>
    %325 = vector.shape_cast %324 : vector<8xf32> to vector<8x1xf32>
    %326 = tpu.reciprocal %325 {approx = true} : vector<8x1xf32> -> vector<8x1xf32>
    %327 = vector.broadcast %326 : vector<8x1xf32> to vector<8x8xf32>
    %328 = arith.mulf %323, %327 : vector<8x8xf32>
    %329 = arith.truncf %328 : vector<8x8xf32> to vector<8x8xbf16>
    %330 = arith.truncf %313 : vector<8x8xf32> to vector<8x8xbf16>
    %cst_199 = arith.constant dense<0.000000e+00> : vector<8x8xf32>
    %331 = tpu.matmul %329, %330, %cst_199 {dimension_numbers = #tpu.dot_dimension_numbers<[1], [0], [0], [1], [0, 0, 1, 1], [], []>} : vector<8x8xbf16>, vector<8x8xbf16>, vector<8x8xf32> -> vector<8x8xf32>
    %332 = arith.truncf %331 : vector<8x8xf32> to vector<8x8xbf16>
    %c0_200 = arith.constant 0 : index
    %c0_201 = arith.constant 0 : index
    %c0_202 = arith.constant 0 : index
    %333 = vector.load %arg11[%c0_200, %c0_201, %c0_202] : memref<4x8x32xbf16, #tpu.memory_space<vmem>>, vector<1x8x32xbf16>
    %334 = vector.shape_cast %333 : vector<1x8x32xbf16> to vector<8x32xbf16>
    %cst_203 = arith.constant dense<0.000000e+00> : vector<8x32xf32>
    %335 = tpu.matmul %332, %334, %cst_203 {dimension_numbers = #tpu.dot_dimension_numbers<[1], [0], [0], [1], [0, 0, 1, 1], [], []>} : vector<8x8xbf16>, vector<8x32xbf16>, vector<8x32xf32> -> vector<8x32xf32>
    %336 = arith.addf %290, %335 : vector<8x32xf32>
    %c1_204 = arith.constant 1 : index
    %c0_205 = arith.constant 0 : index
    %c0_206 = arith.constant 0 : index
    %337 = vector.load %arg5[%c1_204, %c0_205, %c0_206] : memref<4x32x8xbf16, #tpu.memory_space<vmem>>, vector<1x32x8xbf16>
    %338 = vector.shape_cast %337 : vector<1x32x8xbf16> to vector<32x8xbf16>
    %cst_207 = arith.constant dense<0.000000e+00> : vector<8x8xf32>
    %339 = tpu.matmul %289, %338, %cst_207 {dimension_numbers = #tpu.dot_dimension_numbers<[1], [0], [0], [1], [0, 0, 1, 1], [], []>} : vector<8x32xbf16>, vector<32x8xbf16>, vector<8x8xf32> -> vector<8x8xf32>
    %c1_208 = arith.constant 1 : index
    %c0_209 = arith.constant 0 : index
    %c0_210 = arith.constant 0 : index
    %340 = vector.load %arg6[%c1_208, %c0_209, %c0_210] : memref<4x1x8xf32, #tpu.memory_space<vmem>>, vector<1x1x8xf32>
    %341 = vector.shape_cast %340 : vector<1x1x8xf32> to vector<1x8xf32>
    %342 = vector.broadcast %341 : vector<1x8xf32> to vector<8x8xf32>
    %343 = arith.addf %339, %342 : vector<8x8xf32>
    %cst_211 = arith.constant 0.353553385 : f32
    %344 = vector.broadcast %cst_211 : f32 to vector<8x8xf32>
    %345 = arith.mulf %343, %344 : vector<8x8xf32>
    %c1_212 = arith.constant 1 : index
    %c0_213 = arith.constant 0 : index
    %c0_214 = arith.constant 0 : index
    %346 = vector.load %arg7[%c1_212, %c0_213, %c0_214] : memref<4x32x8xbf16, #tpu.memory_space<vmem>>, vector<1x32x8xbf16>
    %347 = vector.shape_cast %346 : vector<1x32x8xbf16> to vector<32x8xbf16>
    %cst_215 = arith.constant dense<0.000000e+00> : vector<8x8xf32>
    %348 = tpu.matmul %289, %347, %cst_215 {dimension_numbers = #tpu.dot_dimension_numbers<[1], [0], [0], [1], [0, 0, 1, 1], [], []>} : vector<8x32xbf16>, vector<32x8xbf16>, vector<8x8xf32> -> vector<8x8xf32>
    %c1_216 = arith.constant 1 : index
    %c0_217 = arith.constant 0 : index
    %c0_218 = arith.constant 0 : index
    %349 = vector.load %arg8[%c1_216, %c0_217, %c0_218] : memref<4x1x8xf32, #tpu.memory_space<vmem>>, vector<1x1x8xf32>
    %350 = vector.shape_cast %349 : vector<1x1x8xf32> to vector<1x8xf32>
    %351 = vector.broadcast %350 : vector<1x8xf32> to vector<8x8xf32>
    %352 = arith.addf %348, %351 : vector<8x8xf32>
    %c1_219 = arith.constant 1 : index
    %c0_220 = arith.constant 0 : index
    %c0_221 = arith.constant 0 : index
    %353 = vector.load %arg9[%c1_219, %c0_220, %c0_221] : memref<4x32x8xbf16, #tpu.memory_space<vmem>>, vector<1x32x8xbf16>
    %354 = vector.shape_cast %353 : vector<1x32x8xbf16> to vector<32x8xbf16>
    %cst_222 = arith.constant dense<0.000000e+00> : vector<8x8xf32>
    %355 = tpu.matmul %289, %354, %cst_222 {dimension_numbers = #tpu.dot_dimension_numbers<[1], [0], [0], [1], [0, 0, 1, 1], [], []>} : vector<8x32xbf16>, vector<32x8xbf16>, vector<8x8xf32> -> vector<8x8xf32>
    %c1_223 = arith.constant 1 : index
    %c0_224 = arith.constant 0 : index
    %c0_225 = arith.constant 0 : index
    %356 = vector.load %arg10[%c1_223, %c0_224, %c0_225] : memref<4x1x8xf32, #tpu.memory_space<vmem>>, vector<1x1x8xf32>
    %357 = vector.shape_cast %356 : vector<1x1x8xf32> to vector<1x8xf32>
    %358 = vector.broadcast %357 : vector<1x8xf32> to vector<8x8xf32>
    %359 = arith.addf %355, %358 : vector<8x8xf32>
    %360 = arith.truncf %345 : vector<8x8xf32> to vector<8x8xbf16>
    %361 = arith.truncf %352 : vector<8x8xf32> to vector<8x8xbf16>
    %cst_226 = arith.constant dense<0.000000e+00> : vector<8x8xf32>
    %362 = tpu.matmul %360, %361, %cst_226 {dimension_numbers = #tpu.dot_dimension_numbers<[1], [1], [0], [0], [0, 0, 1, 0], [], []>} : vector<8x8xbf16>, vector<8x8xbf16>, vector<8x8xf32> -> vector<8x8xf32>
    %cst_227 = arith.constant -1.000000e+09 : f32
    %363 = vector.broadcast %cst_227 : f32 to vector<8x8xf32>
    %364 = arith.select %267, %363, %362 : vector<8x8xi1>, vector<8x8xf32>
    %cst_228 = arith.constant dense<0xFF800000> : vector<8xf32>
    %365 = vector.multi_reduction <maximumf>, %364, %cst_228 [1] : vector<8x8xf32> to vector<8xf32>
    %366 = vector.shape_cast %365 : vector<8xf32> to vector<8x1xf32>
    %367 = vector.broadcast %366 : vector<8x1xf32> to vector<8x8xf32>
    %368 = arith.subf %364, %367 : vector<8x8xf32>
    %369 = math.exp %368 : vector<8x8xf32>
    %cst_229 = arith.constant dense<0.000000e+00> : vector<8xf32>
    %370 = vector.multi_reduction <add>, %369, %cst_229 [1] : vector<8x8xf32> to vector<8xf32>
    %371 = vector.shape_cast %370 : vector<8xf32> to vector<8x1xf32>
    %372 = tpu.reciprocal %371 {approx = true} : vector<8x1xf32> -> vector<8x1xf32>
    %373 = vector.broadcast %372 : vector<8x1xf32> to vector<8x8xf32>
    %374 = arith.mulf %369, %373 : vector<8x8xf32>
    %375 = arith.truncf %374 : vector<8x8xf32> to vector<8x8xbf16>
    %376 = arith.truncf %359 : vector<8x8xf32> to vector<8x8xbf16>
    %cst_230 = arith.constant dense<0.000000e+00> : vector<8x8xf32>
    %377 = tpu.matmul %375, %376, %cst_230 {dimension_numbers = #tpu.dot_dimension_numbers<[1], [0], [0], [1], [0, 0, 1, 1], [], []>} : vector<8x8xbf16>, vector<8x8xbf16>, vector<8x8xf32> -> vector<8x8xf32>
    %378 = arith.truncf %377 : vector<8x8xf32> to vector<8x8xbf16>
    %c1_231 = arith.constant 1 : index
    %c0_232 = arith.constant 0 : index
    %c0_233 = arith.constant 0 : index
    %379 = vector.load %arg11[%c1_231, %c0_232, %c0_233] : memref<4x8x32xbf16, #tpu.memory_space<vmem>>, vector<1x8x32xbf16>
    %380 = vector.shape_cast %379 : vector<1x8x32xbf16> to vector<8x32xbf16>
    %cst_234 = arith.constant dense<0.000000e+00> : vector<8x32xf32>
    %381 = tpu.matmul %378, %380, %cst_234 {dimension_numbers = #tpu.dot_dimension_numbers<[1], [0], [0], [1], [0, 0, 1, 1], [], []>} : vector<8x8xbf16>, vector<8x32xbf16>, vector<8x32xf32> -> vector<8x32xf32>
    %382 = arith.addf %336, %381 : vector<8x32xf32>
    %c2_235 = arith.constant 2 : index
    %c0_236 = arith.constant 0 : index
    %c0_237 = arith.constant 0 : index
    %383 = vector.load %arg5[%c2_235, %c0_236, %c0_237] : memref<4x32x8xbf16, #tpu.memory_space<vmem>>, vector<1x32x8xbf16>
    %384 = vector.shape_cast %383 : vector<1x32x8xbf16> to vector<32x8xbf16>
    %cst_238 = arith.constant dense<0.000000e+00> : vector<8x8xf32>
    %385 = tpu.matmul %289, %384, %cst_238 {dimension_numbers = #tpu.dot_dimension_numbers<[1], [0], [0], [1], [0, 0, 1, 1], [], []>} : vector<8x32xbf16>, vector<32x8xbf16>, vector<8x8xf32> -> vector<8x8xf32>
    %c2_239 = arith.constant 2 : index
    %c0_240 = arith.constant 0 : index
    %c0_241 = arith.constant 0 : index
    %386 = vector.load %arg6[%c2_239, %c0_240, %c0_241] : memref<4x1x8xf32, #tpu.memory_space<vmem>>, vector<1x1x8xf32>
    %387 = vector.shape_cast %386 : vector<1x1x8xf32> to vector<1x8xf32>
    %388 = vector.broadcast %387 : vector<1x8xf32> to vector<8x8xf32>
    %389 = arith.addf %385, %388 : vector<8x8xf32>
    %cst_242 = arith.constant 0.353553385 : f32
    %390 = vector.broadcast %cst_242 : f32 to vector<8x8xf32>
    %391 = arith.mulf %389, %390 : vector<8x8xf32>
    %c2_243 = arith.constant 2 : index
    %c0_244 = arith.constant 0 : index
    %c0_245 = arith.constant 0 : index
    %392 = vector.load %arg7[%c2_243, %c0_244, %c0_245] : memref<4x32x8xbf16, #tpu.memory_space<vmem>>, vector<1x32x8xbf16>
    %393 = vector.shape_cast %392 : vector<1x32x8xbf16> to vector<32x8xbf16>
    %cst_246 = arith.constant dense<0.000000e+00> : vector<8x8xf32>
    %394 = tpu.matmul %289, %393, %cst_246 {dimension_numbers = #tpu.dot_dimension_numbers<[1], [0], [0], [1], [0, 0, 1, 1], [], []>} : vector<8x32xbf16>, vector<32x8xbf16>, vector<8x8xf32> -> vector<8x8xf32>
    %c2_247 = arith.constant 2 : index
    %c0_248 = arith.constant 0 : index
    %c0_249 = arith.constant 0 : index
    %395 = vector.load %arg8[%c2_247, %c0_248, %c0_249] : memref<4x1x8xf32, #tpu.memory_space<vmem>>, vector<1x1x8xf32>
    %396 = vector.shape_cast %395 : vector<1x1x8xf32> to vector<1x8xf32>
    %397 = vector.broadcast %396 : vector<1x8xf32> to vector<8x8xf32>
    %398 = arith.addf %394, %397 : vector<8x8xf32>
    %c2_250 = arith.constant 2 : index
    %c0_251 = arith.constant 0 : index
    %c0_252 = arith.constant 0 : index
    %399 = vector.load %arg9[%c2_250, %c0_251, %c0_252] : memref<4x32x8xbf16, #tpu.memory_space<vmem>>, vector<1x32x8xbf16>
    %400 = vector.shape_cast %399 : vector<1x32x8xbf16> to vector<32x8xbf16>
    %cst_253 = arith.constant dense<0.000000e+00> : vector<8x8xf32>
    %401 = tpu.matmul %289, %400, %cst_253 {dimension_numbers = #tpu.dot_dimension_numbers<[1], [0], [0], [1], [0, 0, 1, 1], [], []>} : vector<8x32xbf16>, vector<32x8xbf16>, vector<8x8xf32> -> vector<8x8xf32>
    %c2_254 = arith.constant 2 : index
    %c0_255 = arith.constant 0 : index
    %c0_256 = arith.constant 0 : index
    %402 = vector.load %arg10[%c2_254, %c0_255, %c0_256] : memref<4x1x8xf32, #tpu.memory_space<vmem>>, vector<1x1x8xf32>
    %403 = vector.shape_cast %402 : vector<1x1x8xf32> to vector<1x8xf32>
    %404 = vector.broadcast %403 : vector<1x8xf32> to vector<8x8xf32>
    %405 = arith.addf %401, %404 : vector<8x8xf32>
    %406 = arith.truncf %391 : vector<8x8xf32> to vector<8x8xbf16>
    %407 = arith.truncf %398 : vector<8x8xf32> to vector<8x8xbf16>
    %cst_257 = arith.constant dense<0.000000e+00> : vector<8x8xf32>
    %408 = tpu.matmul %406, %407, %cst_257 {dimension_numbers = #tpu.dot_dimension_numbers<[1], [1], [0], [0], [0, 0, 1, 0], [], []>} : vector<8x8xbf16>, vector<8x8xbf16>, vector<8x8xf32> -> vector<8x8xf32>
    %cst_258 = arith.constant -1.000000e+09 : f32
    %409 = vector.broadcast %cst_258 : f32 to vector<8x8xf32>
    %410 = arith.select %267, %409, %408 : vector<8x8xi1>, vector<8x8xf32>
    %cst_259 = arith.constant dense<0xFF800000> : vector<8xf32>
    %411 = vector.multi_reduction <maximumf>, %410, %cst_259 [1] : vector<8x8xf32> to vector<8xf32>
    %412 = vector.shape_cast %411 : vector<8xf32> to vector<8x1xf32>
    %413 = vector.broadcast %412 : vector<8x1xf32> to vector<8x8xf32>
    %414 = arith.subf %410, %413 : vector<8x8xf32>
    %415 = math.exp %414 : vector<8x8xf32>
    %cst_260 = arith.constant dense<0.000000e+00> : vector<8xf32>
    %416 = vector.multi_reduction <add>, %415, %cst_260 [1] : vector<8x8xf32> to vector<8xf32>
    %417 = vector.shape_cast %416 : vector<8xf32> to vector<8x1xf32>
    %418 = tpu.reciprocal %417 {approx = true} : vector<8x1xf32> -> vector<8x1xf32>
    %419 = vector.broadcast %418 : vector<8x1xf32> to vector<8x8xf32>
    %420 = arith.mulf %415, %419 : vector<8x8xf32>
    %421 = arith.truncf %420 : vector<8x8xf32> to vector<8x8xbf16>
    %422 = arith.truncf %405 : vector<8x8xf32> to vector<8x8xbf16>
    %cst_261 = arith.constant dense<0.000000e+00> : vector<8x8xf32>
    %423 = tpu.matmul %421, %422, %cst_261 {dimension_numbers = #tpu.dot_dimension_numbers<[1], [0], [0], [1], [0, 0, 1, 1], [], []>} : vector<8x8xbf16>, vector<8x8xbf16>, vector<8x8xf32> -> vector<8x8xf32>
    %424 = arith.truncf %423 : vector<8x8xf32> to vector<8x8xbf16>
    %c2_262 = arith.constant 2 : index
    %c0_263 = arith.constant 0 : index
    %c0_264 = arith.constant 0 : index
    %425 = vector.load %arg11[%c2_262, %c0_263, %c0_264] : memref<4x8x32xbf16, #tpu.memory_space<vmem>>, vector<1x8x32xbf16>
    %426 = vector.shape_cast %425 : vector<1x8x32xbf16> to vector<8x32xbf16>
    %cst_265 = arith.constant dense<0.000000e+00> : vector<8x32xf32>
    %427 = tpu.matmul %424, %426, %cst_265 {dimension_numbers = #tpu.dot_dimension_numbers<[1], [0], [0], [1], [0, 0, 1, 1], [], []>} : vector<8x8xbf16>, vector<8x32xbf16>, vector<8x32xf32> -> vector<8x32xf32>
    %428 = arith.addf %382, %427 : vector<8x32xf32>
    %c3_266 = arith.constant 3 : index
    %c0_267 = arith.constant 0 : index
    %c0_268 = arith.constant 0 : index
    %429 = vector.load %arg5[%c3_266, %c0_267, %c0_268] : memref<4x32x8xbf16, #tpu.memory_space<vmem>>, vector<1x32x8xbf16>
    %430 = vector.shape_cast %429 : vector<1x32x8xbf16> to vector<32x8xbf16>
    %cst_269 = arith.constant dense<0.000000e+00> : vector<8x8xf32>
    %431 = tpu.matmul %289, %430, %cst_269 {dimension_numbers = #tpu.dot_dimension_numbers<[1], [0], [0], [1], [0, 0, 1, 1], [], []>} : vector<8x32xbf16>, vector<32x8xbf16>, vector<8x8xf32> -> vector<8x8xf32>
    %c3_270 = arith.constant 3 : index
    %c0_271 = arith.constant 0 : index
    %c0_272 = arith.constant 0 : index
    %432 = vector.load %arg6[%c3_270, %c0_271, %c0_272] : memref<4x1x8xf32, #tpu.memory_space<vmem>>, vector<1x1x8xf32>
    %433 = vector.shape_cast %432 : vector<1x1x8xf32> to vector<1x8xf32>
    %434 = vector.broadcast %433 : vector<1x8xf32> to vector<8x8xf32>
    %435 = arith.addf %431, %434 : vector<8x8xf32>
    %cst_273 = arith.constant 0.353553385 : f32
    %436 = vector.broadcast %cst_273 : f32 to vector<8x8xf32>
    %437 = arith.mulf %435, %436 : vector<8x8xf32>
    %c3_274 = arith.constant 3 : index
    %c0_275 = arith.constant 0 : index
    %c0_276 = arith.constant 0 : index
    %438 = vector.load %arg7[%c3_274, %c0_275, %c0_276] : memref<4x32x8xbf16, #tpu.memory_space<vmem>>, vector<1x32x8xbf16>
    %439 = vector.shape_cast %438 : vector<1x32x8xbf16> to vector<32x8xbf16>
    %cst_277 = arith.constant dense<0.000000e+00> : vector<8x8xf32>
    %440 = tpu.matmul %289, %439, %cst_277 {dimension_numbers = #tpu.dot_dimension_numbers<[1], [0], [0], [1], [0, 0, 1, 1], [], []>} : vector<8x32xbf16>, vector<32x8xbf16>, vector<8x8xf32> -> vector<8x8xf32>
    %c3_278 = arith.constant 3 : index
    %c0_279 = arith.constant 0 : index
    %c0_280 = arith.constant 0 : index
    %441 = vector.load %arg8[%c3_278, %c0_279, %c0_280] : memref<4x1x8xf32, #tpu.memory_space<vmem>>, vector<1x1x8xf32>
    %442 = vector.shape_cast %441 : vector<1x1x8xf32> to vector<1x8xf32>
    %443 = vector.broadcast %442 : vector<1x8xf32> to vector<8x8xf32>
    %444 = arith.addf %440, %443 : vector<8x8xf32>
    %c3_281 = arith.constant 3 : index
    %c0_282 = arith.constant 0 : index
    %c0_283 = arith.constant 0 : index
    %445 = vector.load %arg9[%c3_281, %c0_282, %c0_283] : memref<4x32x8xbf16, #tpu.memory_space<vmem>>, vector<1x32x8xbf16>
    %446 = vector.shape_cast %445 : vector<1x32x8xbf16> to vector<32x8xbf16>
    %cst_284 = arith.constant dense<0.000000e+00> : vector<8x8xf32>
    %447 = tpu.matmul %289, %446, %cst_284 {dimension_numbers = #tpu.dot_dimension_numbers<[1], [0], [0], [1], [0, 0, 1, 1], [], []>} : vector<8x32xbf16>, vector<32x8xbf16>, vector<8x8xf32> -> vector<8x8xf32>
    %c3_285 = arith.constant 3 : index
    %c0_286 = arith.constant 0 : index
    %c0_287 = arith.constant 0 : index
    %448 = vector.load %arg10[%c3_285, %c0_286, %c0_287] : memref<4x1x8xf32, #tpu.memory_space<vmem>>, vector<1x1x8xf32>
    %449 = vector.shape_cast %448 : vector<1x1x8xf32> to vector<1x8xf32>
    %450 = vector.broadcast %449 : vector<1x8xf32> to vector<8x8xf32>
    %451 = arith.addf %447, %450 : vector<8x8xf32>
    %452 = arith.truncf %437 : vector<8x8xf32> to vector<8x8xbf16>
    %453 = arith.truncf %444 : vector<8x8xf32> to vector<8x8xbf16>
    %cst_288 = arith.constant dense<0.000000e+00> : vector<8x8xf32>
    %454 = tpu.matmul %452, %453, %cst_288 {dimension_numbers = #tpu.dot_dimension_numbers<[1], [1], [0], [0], [0, 0, 1, 0], [], []>} : vector<8x8xbf16>, vector<8x8xbf16>, vector<8x8xf32> -> vector<8x8xf32>
    %cst_289 = arith.constant -1.000000e+09 : f32
    %455 = vector.broadcast %cst_289 : f32 to vector<8x8xf32>
    %456 = arith.select %267, %455, %454 : vector<8x8xi1>, vector<8x8xf32>
    %cst_290 = arith.constant dense<0xFF800000> : vector<8xf32>
    %457 = vector.multi_reduction <maximumf>, %456, %cst_290 [1] : vector<8x8xf32> to vector<8xf32>
    %458 = vector.shape_cast %457 : vector<8xf32> to vector<8x1xf32>
    %459 = vector.broadcast %458 : vector<8x1xf32> to vector<8x8xf32>
    %460 = arith.subf %456, %459 : vector<8x8xf32>
    %461 = math.exp %460 : vector<8x8xf32>
    %cst_291 = arith.constant dense<0.000000e+00> : vector<8xf32>
    %462 = vector.multi_reduction <add>, %461, %cst_291 [1] : vector<8x8xf32> to vector<8xf32>
    %463 = vector.shape_cast %462 : vector<8xf32> to vector<8x1xf32>
    %464 = tpu.reciprocal %463 {approx = true} : vector<8x1xf32> -> vector<8x1xf32>
    %465 = vector.broadcast %464 : vector<8x1xf32> to vector<8x8xf32>
    %466 = arith.mulf %461, %465 : vector<8x8xf32>
    %467 = arith.truncf %466 : vector<8x8xf32> to vector<8x8xbf16>
    %468 = arith.truncf %451 : vector<8x8xf32> to vector<8x8xbf16>
    %cst_292 = arith.constant dense<0.000000e+00> : vector<8x8xf32>
    %469 = tpu.matmul %467, %468, %cst_292 {dimension_numbers = #tpu.dot_dimension_numbers<[1], [0], [0], [1], [0, 0, 1, 1], [], []>} : vector<8x8xbf16>, vector<8x8xbf16>, vector<8x8xf32> -> vector<8x8xf32>
    %470 = arith.truncf %469 : vector<8x8xf32> to vector<8x8xbf16>
    %c3_293 = arith.constant 3 : index
    %c0_294 = arith.constant 0 : index
    %c0_295 = arith.constant 0 : index
    %471 = vector.load %arg11[%c3_293, %c0_294, %c0_295] : memref<4x8x32xbf16, #tpu.memory_space<vmem>>, vector<1x8x32xbf16>
    %472 = vector.shape_cast %471 : vector<1x8x32xbf16> to vector<8x32xbf16>
    %cst_296 = arith.constant dense<0.000000e+00> : vector<8x32xf32>
    %473 = tpu.matmul %470, %472, %cst_296 {dimension_numbers = #tpu.dot_dimension_numbers<[1], [0], [0], [1], [0, 0, 1, 1], [], []>} : vector<8x8xbf16>, vector<8x32xbf16>, vector<8x32xf32> -> vector<8x32xf32>
    %474 = arith.addf %428, %473 : vector<8x32xf32>
    %475 = vector.broadcast %4 : vector<1x32xf32> to vector<8x32xf32>
    %476 = arith.addf %474, %475 : vector<8x32xf32>
    %477 = arith.addf %262, %476 : vector<8x32xf32>
    %cst_297 = arith.constant dense<0.000000e+00> : vector<8xf32>
    %478 = vector.multi_reduction <add>, %477, %cst_297 [1] : vector<8x32xf32> to vector<8xf32>
    %479 = vector.shape_cast %478 : vector<8xf32> to vector<8x1xf32>
    %cst_298 = arith.constant 3.200000e+01 : f32
    %480 = vector.broadcast %cst_298 : f32 to vector<8x1xf32>
    %481 = arith.divf %479, %480 : vector<8x1xf32>
    %482 = vector.broadcast %481 : vector<8x1xf32> to vector<8x32xf32>
    %483 = arith.subf %477, %482 : vector<8x32xf32>
    %484 = arith.mulf %483, %483 : vector<8x32xf32>
    %cst_299 = arith.constant dense<0.000000e+00> : vector<8xf32>
    %485 = vector.multi_reduction <add>, %484, %cst_299 [1] : vector<8x32xf32> to vector<8xf32>
    %486 = vector.shape_cast %485 : vector<8xf32> to vector<8x1xf32>
    %cst_300 = arith.constant 3.100000e+01 : f32
    %487 = vector.broadcast %cst_300 : f32 to vector<8x1xf32>
    %488 = arith.divf %486, %487 : vector<8x1xf32>
    %489 = math.sqrt %488 : vector<8x1xf32>
    %cst_301 = arith.constant 9.99999997E-7 : f32
    %490 = vector.broadcast %cst_301 : f32 to vector<8x1xf32>
    %491 = arith.addf %489, %490 : vector<8x1xf32>
    %492 = tpu.reciprocal %491 {approx = true} : vector<8x1xf32> -> vector<8x1xf32>
    %493 = vector.broadcast %492 : vector<8x1xf32> to vector<8x32xf32>
    %494 = arith.mulf %483, %493 : vector<8x32xf32>
    %495 = vector.broadcast %2 : vector<1x32xf32> to vector<8x32xf32>
    %496 = arith.mulf %495, %494 : vector<8x32xf32>
    %497 = vector.broadcast %3 : vector<1x32xf32> to vector<8x32xf32>
    %498 = arith.addf %496, %497 : vector<8x32xf32>
    %499 = arith.truncf %498 : vector<8x32xf32> to vector<8x32xbf16>
    %c0_302 = arith.constant 0 : index
    %c0_303 = arith.constant 0 : index
    %500 = vector.load %arg15[%c0_302, %c0_303] : memref<32x64xbf16, #tpu.memory_space<vmem>>, vector<32x64xbf16>
    %cst_304 = arith.constant dense<0.000000e+00> : vector<8x64xf32>
    %501 = tpu.matmul %499, %500, %cst_304 {dimension_numbers = #tpu.dot_dimension_numbers<[1], [0], [0], [1], [0, 0, 1, 1], [], []>} : vector<8x32xbf16>, vector<32x64xbf16>, vector<8x64xf32> -> vector<8x64xf32>
    %502 = vector.broadcast %5 : vector<1x64xf32> to vector<8x64xf32>
    %503 = arith.addf %501, %502 : vector<8x64xf32>
    %cst_305 = arith.constant 0.000000e+00 : f32
    %504 = vector.broadcast %cst_305 : f32 to vector<8x64xf32>
    %505 = arith.maximumf %503, %504 : vector<8x64xf32>
    %506 = arith.truncf %505 : vector<8x64xf32> to vector<8x64xbf16>
    %c0_306 = arith.constant 0 : index
    %c0_307 = arith.constant 0 : index
    %507 = vector.load %arg17[%c0_306, %c0_307] : memref<64x32xbf16, #tpu.memory_space<vmem>>, vector<64x32xbf16>
    %cst_308 = arith.constant dense<0.000000e+00> : vector<8x32xf32>
    %508 = tpu.matmul %506, %507, %cst_308 {dimension_numbers = #tpu.dot_dimension_numbers<[1], [0], [0], [1], [0, 0, 1, 1], [], []>} : vector<8x64xbf16>, vector<64x32xbf16>, vector<8x32xf32> -> vector<8x32xf32>
    %509 = vector.broadcast %6 : vector<1x32xf32> to vector<8x32xf32>
    %510 = arith.addf %508, %509 : vector<8x32xf32>
    %511 = arith.addf %477, %510 : vector<8x32xf32>
    %c1_309 = arith.constant 1 : index
    %c0_310 = arith.constant 0 : index
    %c0_311 = arith.constant 0 : index
    %512 = vector.load %arg19[%c1_309, %c0_310, %c0_311] : memref<2x8x32xf32, #tpu.memory_space<vmem>>, vector<1x8x32xf32>
    %513 = vector.shape_cast %512 : vector<1x8x32xf32> to vector<8x32xf32>
    %514 = vector.shape_cast %511 : vector<8x32xf32> to vector<1x8x32xf32>
    tpu.vector_store %arg19[%c1_309, %c0_310, %c0_311], %514 {strides = array<i32>} : memref<2x8x32xf32, #tpu.memory_space<vmem>>, vector<1x8x32xf32>,
    return
  }
  func.func @transform_0(%arg0: i32) -> (i32, i32, i32) {
    %c0_i32 = arith.constant 0 : i32
    %c0_i32_0 = arith.constant 0 : i32
    %c0_i32_1 = arith.constant 0 : i32
    return %arg0, %c0_i32, %c0_i32_0 : i32, i32, i32
  }
  func.func @transform_1(%arg0: i32) -> (i32, i32, i32) {
    %c0_i32 = arith.constant 0 : i32
    %c0_i32_0 = arith.constant 0 : i32
    %c0_i32_1 = arith.constant 0 : i32
    return %arg0, %c0_i32, %c0_i32_0 : i32, i32, i32
  }
  func.func @transform_2(%arg0: i32) -> (i32, i32) {
    %c0_i32 = arith.constant 0 : i32
    %c0_i32_0 = arith.constant 0 : i32
    %c0_i32_1 = arith.constant 0 : i32
    return %c0_i32, %c0_i32_0 : i32, i32
  }
  func.func @transform_3(%arg0: i32) -> (i32, i32) {
    %c0_i32 = arith.constant 0 : i32
    %c0_i32_0 = arith.constant 0 : i32
    %c0_i32_1 = arith.constant 0 : i32
    return %c0_i32, %c0_i32_0 : i32, i32
  }
  func.func @transform_4(%arg0: i32) -> (i32, i32, i32) {
    %c0_i32 = arith.constant 0 : i32
    %c0_i32_0 = arith.constant 0 : i32
    %c0_i32_1 = arith.constant 0 : i32
    %c0_i32_2 = arith.constant 0 : i32
    return %c0_i32, %c0_i32_0, %c0_i32_1 : i32, i32, i32
  }
  func.func @transform_5(%arg0: i32) -> (i32, i32, i32) {
    %c0_i32 = arith.constant 0 : i32
    %c0_i32_0 = arith.constant 0 : i32
    %c0_i32_1 = arith.constant 0 : i32
    %c0_i32_2 = arith.constant 0 : i32
    return %c0_i32, %c0_i32_0, %c0_i32_1 : i32, i32, i32
  }
  func.func @transform_6(%arg0: i32) -> (i32, i32, i32) {
    %c0_i32 = arith.constant 0 : i32
    %c0_i32_0 = arith.constant 0 : i32
    %c0_i32_1 = arith.constant 0 : i32
    %c0_i32_2 = arith.constant 0 : i32
    return %c0_i32, %c0_i32_0, %c0_i32_1 : i32, i32, i32
  }
  func.func @transform_7(%arg0: i32) -> (i32, i32, i32) {
    %c0_i32 = arith.constant 0 : i32
    %c0_i32_0 = arith.constant 0 : i32
    %c0_i32_1 = arith.constant 0 : i32
    %c0_i32_2 = arith.constant 0 : i32
    return %c0_i32, %c0_i32_0, %c0_i32_1 : i32, i32, i32
  }
  func.func @transform_8(%arg0: i32) -> (i32, i32, i32) {
    %c0_i32 = arith.constant 0 : i32
    %c0_i32_0 = arith.constant 0 : i32
    %c0_i32_1 = arith.constant 0 : i32
    %c0_i32_2 = arith.constant 0 : i32
    return %c0_i32, %c0_i32_0, %c0_i32_1 : i32, i32, i32
  }
  func.func @transform_9(%arg0: i32) -> (i32, i32, i32) {
    %c0_i32 = arith.constant 0 : i32
    %c0_i32_0 = arith.constant 0 : i32
    %c0_i32_1 = arith.constant 0 : i32
    %c0_i32_2 = arith.constant 0 : i32
    return %c0_i32, %c0_i32_0, %c0_i32_1 : i32, i32, i32
  }
  func.func @transform_10(%arg0: i32) -> (i32, i32, i32) {
    %c0_i32 = arith.constant 0 : i32
    %c0_i32_0 = arith.constant 0 : i32
    %c0_i32_1 = arith.constant 0 : i32
    %c0_i32_2 = arith.constant 0 : i32
    return %c0_i32, %c0_i32_0, %c0_i32_1 : i32, i32, i32
  }
  func.func @transform_11(%arg0: i32) -> (i32, i32) {
    %c0_i32 = arith.constant 0 : i32
    %c0_i32_0 = arith.constant 0 : i32
    %c0_i32_1 = arith.constant 0 : i32
    return %c0_i32, %c0_i32_0 : i32, i32
  }
  func.func @transform_12(%arg0: i32) -> (i32, i32) {
    %c0_i32 = arith.constant 0 : i32
    %c0_i32_0 = arith.constant 0 : i32
    %c0_i32_1 = arith.constant 0 : i32
    return %c0_i32, %c0_i32_0 : i32, i32
  }
  func.func @transform_13(%arg0: i32) -> (i32, i32) {
    %c0_i32 = arith.constant 0 : i32
    %c0_i32_0 = arith.constant 0 : i32
    %c0_i32_1 = arith.constant 0 : i32
    return %c0_i32, %c0_i32_0 : i32, i32
  }
  func.func @transform_14(%arg0: i32) -> (i32, i32) {
    %c0_i32 = arith.constant 0 : i32
    %c0_i32_0 = arith.constant 0 : i32
    %c0_i32_1 = arith.constant 0 : i32
    return %c0_i32, %c0_i32_0 : i32, i32
  }
  func.func @transform_15(%arg0: i32) -> (i32, i32) {
    %c0_i32 = arith.constant 0 : i32
    %c0_i32_0 = arith.constant 0 : i32
    %c0_i32_1 = arith.constant 0 : i32
    return %c0_i32, %c0_i32_0 : i32, i32
  }
  func.func @transform_16(%arg0: i32) -> (i32, i32) {
    %c0_i32 = arith.constant 0 : i32
    %c0_i32_0 = arith.constant 0 : i32
    %c0_i32_1 = arith.constant 0 : i32
    return %c0_i32, %c0_i32_0 : i32, i32
  }
  func.func @transform_17(%arg0: i32) -> (i32, i32) {
    %c0_i32 = arith.constant 0 : i32
    %c0_i32_0 = arith.constant 0 : i32
    %c0_i32_1 = arith.constant 0 : i32
    return %c0_i32, %c0_i32_0 : i32, i32
  }
  func.func @transform_18(%arg0: i32) -> (i32, i32, i32) {
    %c0_i32 = arith.constant 0 : i32
    %c0_i32_0 = arith.constant 0 : i32
    %c0_i32_1 = arith.constant 0 : i32
    return %arg0, %c0_i32, %c0_i32_0 : i32, i32, i32
  }
}

</mosaic_0001>

<llo_original>
// kernel: tpu_custom_call.1
$region0: #{tpu_custom_call.1}
  #allocation0 [shape = 'u32[]', space=smem, size = 0x4, offset = 0x4, fixed_abs, tag = 'smem constant byte address 0x4 - core index']
  #allocation1 [shape = 'u32[72,128]{1,0:T(1,128)}', space=vmem, size = 0x9000, scoped, tag = 'internal scratch']
  %s0 = inlined_call_operand.vmem [shape: f32[2,8,32], index: 0, kind: input, shape index: {}]
  %s1 = inlined_call_operand.vmem [shape: s8[2,8,8], index: 1, kind: input, shape index: {}]
  %s2 = inlined_call_operand.vmem [shape: f32[1,32], index: 2, kind: input, shape index: {}]
  %s3 = inlined_call_operand.vmem [shape: f32[1,32], index: 3, kind: input, shape index: {}]
  %s4 = inlined_call_operand.vmem [shape: bf16[4,32,8], index: 4, kind: input, shape index: {}]
  %s5 = inlined_call_operand.vmem [shape: f32[4,1,8], index: 5, kind: input, shape index: {}]
  %s6 = inlined_call_operand.vmem [shape: bf16[4,32,8], index: 6, kind: input, shape index: {}]
  %s7 = inlined_call_operand.vmem [shape: f32[4,1,8], index: 7, kind: input, shape index: {}]
  %s8 = inlined_call_operand.vmem [shape: bf16[4,32,8], index: 8, kind: input, shape index: {}]
  %s9 = inlined_call_operand.vmem [shape: f32[4,1,8], index: 9, kind: input, shape index: {}]
  %s10 = inlined_call_operand.vmem [shape: bf16[4,8,32], index: 10, kind: input, shape index: {}]
  %s11 = inlined_call_operand.vmem [shape: f32[1,32], index: 11, kind: input, shape index: {}]
  %s12 = inlined_call_operand.vmem [shape: f32[1,32], index: 12, kind: input, shape index: {}]
  %s13 = inlined_call_operand.vmem [shape: f32[1,32], index: 13, kind: input, shape index: {}]
  %s14 = inlined_call_operand.vmem [shape: bf16[32,64], index: 14, kind: input, shape index: {}]
  %s15 = inlined_call_operand.vmem [shape: f32[1,64], index: 15, kind: input, shape index: {}]
  %s16 = inlined_call_operand.vmem [shape: bf16[64,32], index: 16, kind: input, shape index: {}]
  %s17 = inlined_call_operand.vmem [shape: f32[1,32], index: 17, kind: input, shape index: {}]
  %s18 = inlined_call_operand.hbm [shape: f32[2,8,32], index: 18, kind: output, shape index: {}]
  %s19 = sld [smem:[#allocation0]]
  $region82: #{tpu_custom_call.1} parent=0
    _
  %s21 = ssub.s32 1, %s19
  %s22 = scalar_select 0, %s21, %s19
  $region1: #{tpu_custom_call.1} parent=0
    #allocation2 [shape = 'u8[8192]{0}', space=vmem, size = 0x2000, scoped, tag = 'output window, operand 0, single buffered']
    #allocation3 [shape = 's32[1]{0}', space=sflag, size = 0x4, scoped, tag = 'scoped memory for tpu_custom_call.1']
    %23 = vsyncpa [#allocation3], 0
    // Predicated region
    $region2: #{tpu_custom_call.1} parent=1 // pred_check
      _
    $region3: #{tpu_custom_call.1} parent=1 // pred_check_branch
      %25 = sbr.rel (0) target = $region5
    $region4: #{tpu_custom_call.1} parent=1 // pred_region
      _
    $region5: #{tpu_custom_call.1} parent=1 // pred_fallthru
      _
    // Predicated region
    $region6: #{tpu_custom_call.1} parent=1 // pred_check
      _
    $region7: #{tpu_custom_call.1} parent=1 // pred_check_branch
      %27 = sbr.rel (0) target = $region9
    $region8: #{tpu_custom_call.1} parent=1 // pred_region
      _
    $region9: #{tpu_custom_call.1} parent=1 // pred_fallthru
      _
    // Predicated region
    $region10: #{tpu_custom_call.1} parent=1 // pred_check
      _
    $region11: #{tpu_custom_call.1} parent=1 // pred_check_branch
      %29 = sbr.rel (0) target = $region13
    $region12: #{tpu_custom_call.1} parent=1 // pred_region
      _
    $region13: #{tpu_custom_call.1} parent=1 // pred_fallthru
      _
    // Predicated region
    $region14: #{tpu_custom_call.1} parent=1 // pred_check
      _
    $region15: #{tpu_custom_call.1} parent=1 // pred_check_branch
      %31 = sbr.rel (0) target = $region17
    $region16: #{tpu_custom_call.1} parent=1 // pred_region
      _
    $region17: #{tpu_custom_call.1} parent=1 // pred_fallthru
      _
    // Predicated region
    $region18: #{tpu_custom_call.1} parent=1 // pred_check
      _
    $region19: #{tpu_custom_call.1} parent=1 // pred_check_branch
      %33 = sbr.rel (0) target = $region21
    $region20: #{tpu_custom_call.1} parent=1 // pred_region
      _
    $region21: #{tpu_custom_call.1} parent=1 // pred_fallthru
      _
    // Predicated region
    $region22: #{tpu_custom_call.1} parent=1 // pred_check
      _
    $region23: #{tpu_custom_call.1} parent=1 // pred_check_branch
      %35 = sbr.rel (0) target = $region25
    $region24: #{tpu_custom_call.1} parent=1 // pred_region
      _
    $region25: #{tpu_custom_call.1} parent=1 // pred_fallthru
      _
    // Predicated region
    $region26: #{tpu_custom_call.1} parent=1 // pred_check
      _
    $region27: #{tpu_custom_call.1} parent=1 // pred_check_branch
      %37 = sbr.rel (0) target = $region29
    $region28: #{tpu_custom_call.1} parent=1 // pred_region
      _
    $region29: #{tpu_custom_call.1} parent=1 // pred_fallthru
      _
    // Predicated region
    $region30: #{tpu_custom_call.1} parent=1 // pred_check
      _
    $region31: #{tpu_custom_call.1} parent=1 // pred_check_branch
      %39 = sbr.rel (0) target = $region33
    $region32: #{tpu_custom_call.1} parent=1 // pred_region
      _
    $region33: #{tpu_custom_call.1} parent=1 // pred_fallthru
      _
    // Predicated region
    $region34: #{tpu_custom_call.1} parent=1 // pred_check
      _
    $region35: #{tpu_custom_call.1} parent=1 // pred_check_branch
      %41 = sbr.rel (0) target = $region37
    $region36: #{tpu_custom_call.1} parent=1 // pred_region
      _
    $region37: #{tpu_custom_call.1} parent=1 // pred_fallthru
      _
    // Predicated region
    $region38: #{tpu_custom_call.1} parent=1 // pred_check
      _
    $region39: #{tpu_custom_call.1} parent=1 // pred_check_branch
      %43 = sbr.rel (0) target = $region41
    $region40: #{tpu_custom_call.1} parent=1 // pred_region
      _
    $region41: #{tpu_custom_call.1} parent=1 // pred_fallthru
      _
    // Predicated region
    $region42: #{tpu_custom_call.1} parent=1 // pred_check
      _
    $region43: #{tpu_custom_call.1} parent=1 // pred_check_branch
      %45 = sbr.rel (0) target = $region45
    $region44: #{tpu_custom_call.1} parent=1 // pred_region
      _
    $region45: #{tpu_custom_call.1} parent=1 // pred_fallthru
      _
    // Predicated region
    $region46: #{tpu_custom_call.1} parent=1 // pred_check
      _
    $region47: #{tpu_custom_call.1} parent=1 // pred_check_branch
      %47 = sbr.rel (0) target = $region49
    $region48: #{tpu_custom_call.1} parent=1 // pred_region
      _
    $region49: #{tpu_custom_call.1} parent=1 // pred_fallthru
      _
    // Predicated region
    $region50: #{tpu_custom_call.1} parent=1 // pred_check
      _
    $region51: #{tpu_custom_call.1} parent=1 // pred_check_branch
      %49 = sbr.rel (0) target = $region53
    $region52: #{tpu_custom_call.1} parent=1 // pred_region
      _
    $region53: #{tpu_custom_call.1} parent=1 // pred_fallthru
      _
    // Predicated region
    $region54: #{tpu_custom_call.1} parent=1 // pred_check
      _
    $region55: #{tpu_custom_call.1} parent=1 // pred_check_branch
      %51 = sbr.rel (0) target = $region57
    $region56: #{tpu_custom_call.1} parent=1 // pred_region
      _
    $region57: #{tpu_custom_call.1} parent=1 // pred_fallthru
      _
    // Predicated region
    $region58: #{tpu_custom_call.1} parent=1 // pred_check
      _
    $region59: #{tpu_custom_call.1} parent=1 // pred_check_branch
      %53 = sbr.rel (0) target = $region61
    $region60: #{tpu_custom_call.1} parent=1 // pred_region
      _
    $region61: #{tpu_custom_call.1} parent=1 // pred_fallthru
      _
    // Predicated region
    $region62: #{tpu_custom_call.1} parent=1 // pred_check
      _
    $region63: #{tpu_custom_call.1} parent=1 // pred_check_branch
      %55 = sbr.rel (0) target = $region65
    $region64: #{tpu_custom_call.1} parent=1 // pred_region
      _
    $region65: #{tpu_custom_call.1} parent=1 // pred_fallthru
      _
    // Predicated region
    $region66: #{tpu_custom_call.1} parent=1 // pred_check
      _
    $region67: #{tpu_custom_call.1} parent=1 // pred_check_branch
      %57 = sbr.rel (0) target = $region69
    $region68: #{tpu_custom_call.1} parent=1 // pred_region
      _
    $region69: #{tpu_custom_call.1} parent=1 // pred_fallthru
      _
    // Predicated region
    $region70: #{tpu_custom_call.1} parent=1 // pred_check
      _
    $region71: #{tpu_custom_call.1} parent=1 // pred_check_branch
      %59 = sbr.rel (0) target = $region73
    $region72: #{tpu_custom_call.1} parent=1 // pred_region
      _
    $region73: #{tpu_custom_call.1} parent=1 // pred_fallthru
      _
    %v61 = vld [vmem:[%s2] sm:$0x1]
    %v62 = vld [vmem:[%s3] sm:$0x1]
    %v63 = vld [vmem:[%s12] sm:$0x1]
    %v64 = vld [vmem:[%s13] sm:$0x1]
    %v65 = vld [vmem:[%s11] sm:$0x1]
    %v66 = vld [vmem:[%s15] sm:$0x1]
    %v67 = vld [vmem:[%s17] sm:$0x1]
    %v68 = vld [vmem:[%s0] sm:$0xff]
    %v69 = vld [vmem:[%s1] sm:$0x3]
    %v70 = vunpack.c.0.s8 %v69
    %vm71 = vcmp.eq.s32.totalorder %v70, 0
    %vm72 = vcmask 261120
    %v73 = vsel %vm72, %v68, 0.0
    %74 = vadd.xlane.f32.xlu0 %v73
    %v75 = vpop.xlane.xlu0 %74
    %v76 = vrcp.pop 32.0
    %v77 = vmul.f32 32.0, %v76
    %v78 = vsub.f32 1.0, %v77
    %v79 = vmul.f32 %v76, %v78
    %v80 = vadd.f32 %v76, %v79
    %vm81 = vweird.f32 %v76
    %v82 = vsel %vm81, %v76, %v80
    %v83 = vmul.f32 %v75, %v82
    %v84 = vsub.f32 %v68, %v83
    %v85 = vmul.f32 %v84, %v84
    %v86 = vsel %vm72, %v85, 0.0
    %87 = vadd.xlane.f32.xlu0 %v86
    %v88 = vpop.xlane.xlu0 %87
    %v89 = vrcp.pop 31.0
    %v90 = vmul.f32 31.0, %v89
    %v91 = vsub.f32 1.0, %v90
    %v92 = vmul.f32 %v89, %v91
    %v93 = vadd.f32 %v89, %v92
    %vm94 = vweird.f32 %v89
    %v95 = vsel %vm94, %v89, %v93
    %v96 = vmul.f32 %v88, %v95
    %v97 = vrsqrt.pop %v96
    %v98 = vmul.f32 %v97, %v96
    %v99 = vmul.f32 %v98, %v97
    %v100 = vmul.f32 0.5, %v99
    %v101 = vsub.f32 1.5, %v100
    %v102 = vmul.f32 %v97, %v101
    %v103 = vmul.f32 %v96, %v102
    %vm104 = vcmp.eq.f32.partialorder %v96, inf
    %v105 = vsel %vm104, %v96, %v103
    %vm106 = vcmp.eq.f32.partialorder %v96, 0.0
    %v107 = vand.u32 %v96, 2147483648
    %v108 = vsel %vm106, %v107, %v105
    %v109 = vadd.f32 %v108, 1e-06
    %v110 = vrcp.pop %v109
    %v111 = vmul.f32 %v84, %v110
    %v113 = vperm.slane %v61, 0
    %v115 = vmul.f32 %v113, %v111
    %v117 = vperm.slane %v62, 0
    %v119 = vadd.f32 %v115, %v117
    %v120 = vpack.c.bf16 %v119, %v119
    %v121 = vld [vmem:[%s4] sm:$0xf]
    %v122 = vld [vmem:[%s4 + $0x4] sm:$0xf]
    %v123 = vld [vmem:[%s4 + $0x8] sm:$0xf]
    %v124 = vld [vmem:[%s4 + $0xc] sm:$0xf]
    %v125 = vld [vmem:[%s5] sm:$0x1]
    %v127 = vperm.slane %v125, 0
    %v133 = vunpack.c.l.b16 %v121
    %v134 = vunpack.c.l.b16 %v122
    %v135 = vunpack.c.l.b16 %v123
    %v136 = vunpack.c.l.b16 %v124
    %v137 = vpack.c.b16 %v134, %v133
    %v138 = vpack.c.b16 %v136, %v135
    %v142 = vsel %vm72, %v120, 0
    %144 = vmatpush.bf16.msra.mxu0 0
    %145 = vmatpush.bf16.msra.mxu0 0
    %146 = vmatpush.bf16.msra.mxu0 0
    %147 = vmatpush.bf16.msra.mxu0 0
    %148 = vmatpush.bf16.msra.mxu0 0
    %149 = vmatpush.bf16.msra.mxu0 0
    %150 = vmatpush.bf16.msra.mxu0 %v138
    %151 = vmatpush.bf16.msra.mxu0 %v137
    %152 = vmatmul.bf16.gmra.mxu0 %v142
    %v153 = vpop.f32.mrf.mxu0
    %v154 = vadd.f32 %v127, %v153
    %v155 = vpop.f32.mrf.mxu0
    %156 = vdwg.mxu0
    %v157 = vmul.f32 %v154, 0.35355338
    %v158 = vld [vmem:[%s6] sm:$0xf]
    %v159 = vld [vmem:[%s6 + $0x4] sm:$0xf]
    %v160 = vld [vmem:[%s6 + $0x8] sm:$0xf]
    %v161 = vld [vmem:[%s6 + $0xc] sm:$0xf]
    %v162 = vld [vmem:[%s7] sm:$0x1]
    %v164 = vperm.slane %v162, 0
    %v170 = vunpack.c.l.b16 %v158
    %v171 = vunpack.c.l.b16 %v159
    %v172 = vunpack.c.l.b16 %v160
    %v173 = vunpack.c.l.b16 %v161
    %v174 = vpack.c.b16 %v171, %v170
    %v175 = vpack.c.b16 %v173, %v172
    %178 = vmatpush.bf16.msra.mxu0 0
    %179 = vmatpush.bf16.msra.mxu0 0
    %180 = vmatpush.bf16.msra.mxu0 0
    %181 = vmatpush.bf16.msra.mxu0 0
    %182 = vmatpush.bf16.msra.mxu0 0
    %183 = vmatpush.bf16.msra.mxu0 0
    %184 = vmatpush.bf16.msra.mxu0 %v175
    %185 = vmatpush.bf16.msra.mxu0 %v174
    %186 = vmatmul.bf16.gmra.mxu0 %v142
    %v187 = vpop.f32.mrf.mxu0
    %v188 = vadd.f32 %v164, %v187
    %v189 = vpop.f32.mrf.mxu0
    %190 = vdwg.mxu0
    %v191 = vld [vmem:[%s8] sm:$0xf]
    %v192 = vld [vmem:[%s8 + $0x4] sm:$0xf]
    %v193 = vld [vmem:[%s8 + $0x8] sm:$0xf]
    %v194 = vld [vmem:[%s8 + $0xc] sm:$0xf]
    %v195 = vld [vmem:[%s9] sm:$0x1]
    %v197 = vperm.slane %v195, 0
    %v203 = vunpack.c.l.b16 %v191
    %v204 = vunpack.c.l.b16 %v192
    %v205 = vunpack.c.l.b16 %v193
    %v206 = vunpack.c.l.b16 %v194
    %v207 = vpack.c.b16 %v204, %v203
    %v208 = vpack.c.b16 %v206, %v205
    %211 = vmatpush.bf16.msra.mxu0 0
    %212 = vmatpush.bf16.msra.mxu0 0
    %213 = vmatpush.bf16.msra.mxu0 0
    %214 = vmatpush.bf16.msra.mxu0 0
    %215 = vmatpush.bf16.msra.mxu0 0
    %216 = vmatpush.bf16.msra.mxu0 0
    %217 = vmatpush.bf16.msra.mxu0 %v208
    %218 = vmatpush.bf16.msra.mxu0 %v207
    %219 = vmatmul.bf16.gmra.mxu0 %v142
    %v220 = vpop.f32.mrf.mxu0
    %v221 = vadd.f32 %v197, %v220
    %v222 = vpop.f32.mrf.mxu0
    %223 = vdwg.mxu0
    %v224 = vpack.c.bf16 %v157, %v157
    %v225 = vpack.c.bf16 %v188, %v188
    %vm226 = vcmask 64512
    %v228 = vsel %vm226, %v224, 0
    %v231 = vsel %vm226, %v225, 0
    %233 = vmatpush.bf16.xpose.msra.mxu0 0
    %234 = vmatpush.bf16.xpose.msra.mxu0 0
    %235 = vmatpush.bf16.xpose.msra.mxu0 0
    %236 = vmatpush.bf16.xpose.msra.mxu0 0
    %237 = vmatpush.bf16.xpose.msra.mxu0 0
    %238 = vmatpush.bf16.xpose.msra.mxu0 0
    %239 = vmatpush.bf16.xpose.msra.mxu0 0
    %240 = vmatpush.bf16.xpose.msra.mxu0 %v231
    %241 = vmatmul.bf16.gmra.mxu0 %v228
    %v242 = vpop.f32.mrf.mxu0
    %v243 = vadd.f32 0.0, %v242
    %v244 = vpop.f32.mrf.mxu0
    %245 = vdwg.mxu0
    %v246 = vsel %vm71, -1e+09, %v243
    %v247 = vsel %vm226, %v246, -inf
    %248 = vmax.xlane.f32.xlu0 %v247
    %v249 = vpop.xlane.xlu0 %248
    %v250 = vsub.f32 %v246, %v249
    %v251 = vmul.f32 %v250, 1.442695
    %v252 = vpow.pop %v251
    %v253 = vsel %vm226, %v252, 0.0
    %254 = vadd.xlane.f32.xlu0 %v253
    %v255 = vpop.xlane.xlu0 %254
    %v256 = vrcp.pop %v255
    %v257 = vmul.f32 %v252, %v256
    %v258 = vpack.c.bf16 %v257, %v257
    %v259 = vpack.c.bf16 %v221, %v221
    %v261 = vsel %vm226, %v258, 0
    %vm263 = vcmask 1043456
    %v265 = vsel %vm263, %v259, 0
    %267 = vmatpush.bf16.msra.mxu0 0
    %268 = vmatpush.bf16.msra.mxu0 0
    %269 = vmatpush.bf16.msra.mxu0 0
    %270 = vmatpush.bf16.msra.mxu0 0
    %271 = vmatpush.bf16.msra.mxu0 0
    %272 = vmatpush.bf16.msra.mxu0 0
    %273 = vmatpush.bf16.msra.mxu0 0
    %274 = vmatpush.bf16.msra.mxu0 %v265
    %275 = vmatmul.bf16.gmra.mxu0 %v261
    %v276 = vpop.f32.mrf.mxu0
    %v277 = vadd.f32 0.0, %v276
    %v278 = vpop.f32.mrf.mxu0
    %279 = vdwg.mxu0
    %v280 = vpack.c.bf16 %v277, %v277
    %v281 = vld [vmem:[%s10] sm:$0xf]
    %s282 = scalar_lea.vmem %s4, 16
    %v283 = vld [vmem:[%s282] sm:$0xf]
    %v284 = vld [vmem:[%s282 + $0x4] sm:$0xf]
    %v285 = vld [vmem:[%s282 + $0x8] sm:$0xf]
    %v286 = vld [vmem:[%s282 + $0xc] sm:$0xf]
    %s287 = scalar_lea.vmem %s5, 1
    %v288 = vld [vmem:[%s287] sm:$0x1]
    %v290 = vperm.slane %v288, 0
    %v296 = vunpack.c.l.b16 %v283
    %v297 = vunpack.c.l.b16 %v284
    %v298 = vunpack.c.l.b16 %v285
    %v299 = vunpack.c.l.b16 %v286
    %v300 = vpack.c.b16 %v297, %v296
    %v301 = vpack.c.b16 %v299, %v298
    %304 = vmatpush.bf16.msra.mxu0 0
    %305 = vmatpush.bf16.msra.mxu0 0
    %306 = vmatpush.bf16.msra.mxu0 0
    %307 = vmatpush.bf16.msra.mxu0 0
    %308 = vmatpush.bf16.msra.mxu0 0
    %309 = vmatpush.bf16.msra.mxu0 0
    %310 = vmatpush.bf16.msra.mxu0 %v301
    %311 = vmatpush.bf16.msra.mxu0 %v300
    %312 = vmatmul.bf16.gmra.mxu0 %v142
    %v313 = vpop.f32.mrf.mxu0
    %v314 = vadd.f32 %v290, %v313
    %v315 = vpop.f32.mrf.mxu0
    %316 = vdwg.mxu0
    %v317 = vmul.f32 %v314, 0.35355338
    %s318 = scalar_lea.vmem %s6, 16
    %v319 = vld [vmem:[%s318] sm:$0xf]
    %v320 = vld [vmem:[%s318 + $0x4] sm:$0xf]
    %v321 = vld [vmem:[%s318 + $0x8] sm:$0xf]
    %v322 = vld [vmem:[%s318 + $0xc] sm:$0xf]
    %s323 = scalar_lea.vmem %s7, 1
    %v324 = vld [vmem:[%s323] sm:$0x1]
    %v326 = vperm.slane %v324, 0
    %v332 = vunpack.c.l.b16 %v319
    %v333 = vunpack.c.l.b16 %v320
    %v334 = vunpack.c.l.b16 %v321
    %v335 = vunpack.c.l.b16 %v322
    %v336 = vpack.c.b16 %v333, %v332
    %v337 = vpack.c.b16 %v335, %v334
    %340 = vmatpush.bf16.msra.mxu0 0
    %341 = vmatpush.bf16.msra.mxu0 0
    %342 = vmatpush.bf16.msra.mxu0 0
    %343 = vmatpush.bf16.msra.mxu0 0
    %344 = vmatpush.bf16.msra.mxu0 0
    %345 = vmatpush.bf16.msra.mxu0 0
    %346 = vmatpush.bf16.msra.mxu0 %v337
    %347 = vmatpush.bf16.msra.mxu0 %v336
    %348 = vmatmul.bf16.gmra.mxu0 %v142
    %v349 = vpop.f32.mrf.mxu0
    %v350 = vadd.f32 %v326, %v349
    %v351 = vpop.f32.mrf.mxu0
    %352 = vdwg.mxu0
    %s353 = scalar_lea.vmem %s8, 16
    %v354 = vld [vmem:[%s353] sm:$0xf]
    %v355 = vld [vmem:[%s353 + $0x4] sm:$0xf]
    %v356 = vld [vmem:[%s353 + $0x8] sm:$0xf]
    %v357 = vld [vmem:[%s353 + $0xc] sm:$0xf]
    %s358 = scalar_lea.vmem %s9, 1
    %v359 = vld [vmem:[%s358] sm:$0x1]
    %v361 = vperm.slane %v359, 0
    %v367 = vunpack.c.l.b16 %v354
    %v368 = vunpack.c.l.b16 %v355
    %v369 = vunpack.c.l.b16 %v356
    %v370 = vunpack.c.l.b16 %v357
    %v371 = vpack.c.b16 %v368, %v367
    %v372 = vpack.c.b16 %v370, %v369
    %375 = vmatpush.bf16.msra.mxu0 0
    %376 = vmatpush.bf16.msra.mxu0 0
    %377 = vmatpush.bf16.msra.mxu0 0
    %378 = vmatpush.bf16.msra.mxu0 0
    %379 = vmatpush.bf16.msra.mxu0 0
    %380 = vmatpush.bf16.msra.mxu0 0
    %381 = vmatpush.bf16.msra.mxu0 %v372
    %382 = vmatpush.bf16.msra.mxu0 %v371
    %383 = vmatmul.bf16.gmra.mxu0 %v142
    %v384 = vpop.f32.mrf.mxu0
    %v385 = vadd.f32 %v361, %v384
    %v386 = vpop.f32.mrf.mxu0
    %387 = vdwg.mxu0
    %v388 = vpack.c.bf16 %v317, %v317
    %v389 = vpack.c.bf16 %v350, %v350
    %v391 = vsel %vm226, %v388, 0
    %v394 = vsel %vm226, %v389, 0
    %396 = vmatpush.bf16.xpose.msra.mxu0 0
    %397 = vmatpush.bf16.xpose.msra.mxu0 0
    %398 = vmatpush.bf16.xpose.msra.mxu0 0
    %399 = vmatpush.bf16.xpose.msra.mxu0 0
    %400 = vmatpush.bf16.xpose.msra.mxu0 0
    %401 = vmatpush.bf16.xpose.msra.mxu0 0
    %402 = vmatpush.bf16.xpose.msra.mxu0 0
    %403 = vmatpush.bf16.xpose.msra.mxu0 %v394
    %404 = vmatmul.bf16.gmra.mxu0 %v391
    %v405 = vpop.f32.mrf.mxu0
    %v406 = vadd.f32 0.0, %v405
    %v407 = vpop.f32.mrf.mxu0
    %408 = vdwg.mxu0
    %v409 = vsel %vm71, -1e+09, %v406
    %v410 = vsel %vm226, %v409, -inf
    %411 = vmax.xlane.f32.xlu0 %v410
    %v412 = vpop.xlane.xlu0 %411
    %v413 = vsub.f32 %v409, %v412
    %v414 = vmul.f32 %v413, 1.442695
    %v415 = vpow.pop %v414
    %v416 = vsel %vm226, %v415, 0.0
    %417 = vadd.xlane.f32.xlu0 %v416
    %v418 = vpop.xlane.xlu0 %417
    %v419 = vrcp.pop %v418
    %v420 = vmul.f32 %v415, %v419
    %v421 = vpack.c.bf16 %v420, %v420
    %v422 = vpack.c.bf16 %v385, %v385
    %v424 = vsel %vm226, %v421, 0
    %v427 = vsel %vm263, %v422, 0
    %429 = vmatpush.bf16.msra.mxu0 0
    %430 = vmatpush.bf16.msra.mxu0 0
    %431 = vmatpush.bf16.msra.mxu0 0
    %432 = vmatpush.bf16.msra.mxu0 0
    %433 = vmatpush.bf16.msra.mxu0 0
    %434 = vmatpush.bf16.msra.mxu0 0
    %435 = vmatpush.bf16.msra.mxu0 0
    %436 = vmatpush.bf16.msra.mxu0 %v427
    %437 = vmatmul.bf16.gmra.mxu0 %v424
    %v438 = vpop.f32.mrf.mxu0
    %v439 = vadd.f32 0.0, %v438
    %v440 = vpop.f32.mrf.mxu0
    %441 = vdwg.mxu0
    %v442 = vpack.c.bf16 %v439, %v439
    %s443 = scalar_lea.vmem %s10, 4
    %v444 = vld [vmem:[%s443] sm:$0xf]
    %v446 = vsel %vm226, %v442, 0
    %v449 = vsel %vm263, %v444, 0
    %451 = vmatpush.bf16.msra.mxu0 0
    %452 = vmatpush.bf16.msra.mxu0 0
    %453 = vmatpush.bf16.msra.mxu0 0
    %454 = vmatpush.bf16.msra.mxu0 0
    %455 = vmatpush.bf16.msra.mxu0 0
    %456 = vmatpush.bf16.msra.mxu0 0
    %457 = vmatpush.bf16.msra.mxu0 0
    %458 = vmatpush.bf16.msra.mxu0 %v449
    %459 = vmatmul.bf16.gmra.mxu0 %v446
    %v460 = vpop.f32.mrf.mxu0
    %v461 = vadd.f32 0.0, %v460
    %v462 = vpop.f32.mrf.mxu0
    %463 = vdwg.mxu0
    %v465 = vsel %vm226, %v280, 0
    %v468 = vsel %vm263, %v281, 0
    %470 = vmatpush.bf16.msra.mxu0 0
    %471 = vmatpush.bf16.msra.mxu0 0
    %472 = vmatpush.bf16.msra.mxu0 0
    %473 = vmatpush.bf16.msra.mxu0 0
    %474 = vmatpush.bf16.msra.mxu0 0
    %475 = vmatpush.bf16.msra.mxu0 0
    %476 = vmatpush.bf16.msra.mxu0 0
    %477 = vmatpush.bf16.msra.mxu0 %v468
    %478 = vmatmul.bf16.gmra.mxu0 %v465
    %v479 = vpop.f32.mrf.mxu0
    %v480 = vadd.f32 %v461, %v479
    %v481 = vpop.f32.mrf.mxu0
    %482 = vdwg.mxu0
    %s483 = scalar_lea.vmem %s4, 32
    %v484 = vld [vmem:[%s483] sm:$0xf]
    %v485 = vld [vmem:[%s483 + $0x4] sm:$0xf]
    %v486 = vld [vmem:[%s483 + $0x8] sm:$0xf]
    %v487 = vld [vmem:[%s483 + $0xc] sm:$0xf]
    %s488 = scalar_lea.vmem %s5, 2
    %v489 = vld [vmem:[%s488] sm:$0x1]
    %v491 = vperm.slane %v489, 0
    %v497 = vunpack.c.l.b16 %v484
    %v498 = vunpack.c.l.b16 %v485
    %v499 = vunpack.c.l.b16 %v486
    %v500 = vunpack.c.l.b16 %v487
    %v501 = vpack.c.b16 %v498, %v497
    %v502 = vpack.c.b16 %v500, %v499
    %505 = vmatpush.bf16.msra.mxu0 0
    %506 = vmatpush.bf16.msra.mxu0 0
    %507 = vmatpush.bf16.msra.mxu0 0
    %508 = vmatpush.bf16.msra.mxu0 0
    %509 = vmatpush.bf16.msra.mxu0 0
    %510 = vmatpush.bf16.msra.mxu0 0
    %511 = vmatpush.bf16.msra.mxu0 %v502
    %512 = vmatpush.bf16.msra.mxu0 %v501
    %513 = vmatmul.bf16.gmra.mxu0 %v142
    %v514 = vpop.f32.mrf.mxu0
    %v515 = vadd.f32 %v491, %v514
    %v516 = vpop.f32.mrf.mxu0
    %517 = vdwg.mxu0
    %v518 = vmul.f32 %v515, 0.35355338
    %s519 = scalar_lea.vmem %s6, 32
    %v520 = vld [vmem:[%s519] sm:$0xf]
    %v521 = vld [vmem:[%s519 + $0x4] sm:$0xf]
    %v522 = vld [vmem:[%s519 + $0x8] sm:$0xf]
    %v523 = vld [vmem:[%s519 + $0xc] sm:$0xf]
    %s524 = scalar_lea.vmem %s7, 2
    %v525 = vld [vmem:[%s524] sm:$0x1]
    %v527 = vperm.slane %v525, 0
    %v533 = vunpack.c.l.b16 %v520
    %v534 = vunpack.c.l.b16 %v521
    %v535 = vunpack.c.l.b16 %v522
    %v536 = vunpack.c.l.b16 %v523
    %v537 = vpack.c.b16 %v534, %v533
    %v538 = vpack.c.b16 %v536, %v535
    %541 = vmatpush.bf16.msra.mxu0 0
    %542 = vmatpush.bf16.msra.mxu0 0
    %543 = vmatpush.bf16.msra.mxu0 0
    %544 = vmatpush.bf16.msra.mxu0 0
    %545 = vmatpush.bf16.msra.mxu0 0
    %546 = vmatpush.bf16.msra.mxu0 0
    %547 = vmatpush.bf16.msra.mxu0 %v538
    %548 = vmatpush.bf16.msra.mxu0 %v537
    %549 = vmatmul.bf16.gmra.mxu0 %v142
    %v550 = vpop.f32.mrf.mxu0
    %v551 = vadd.f32 %v527, %v550
    %v552 = vpop.f32.mrf.mxu0
    %553 = vdwg.mxu0
    %s554 = scalar_lea.vmem %s8, 32
    %v555 = vld [vmem:[%s554] sm:$0xf]
    %v556 = vld [vmem:[%s554 + $0x4] sm:$0xf]
    %v557 = vld [vmem:[%s554 + $0x8] sm:$0xf]
    %v558 = vld [vmem:[%s554 + $0xc] sm:$0xf]
    %s559 = scalar_lea.vmem %s9, 2
    %v560 = vld [vmem:[%s559] sm:$0x1]
    %v562 = vperm.slane %v560, 0
    %v568 = vunpack.c.l.b16 %v555
    %v569 = vunpack.c.l.b16 %v556
    %v570 = vunpack.c.l.b16 %v557
    %v571 = vunpack.c.l.b16 %v558
    %v572 = vpack.c.b16 %v569, %v568
    %v573 = vpack.c.b16 %v571, %v570
    %576 = vmatpush.bf16.msra.mxu0 0
    %577 = vmatpush.bf16.msra.mxu0 0
    %578 = vmatpush.bf16.msra.mxu0 0
    %579 = vmatpush.bf16.msra.mxu0 0
    %580 = vmatpush.bf16.msra.mxu0 0
    %581 = vmatpush.bf16.msra.mxu0 0
    %582 = vmatpush.bf16.msra.mxu0 %v573
    %583 = vmatpush.bf16.msra.mxu0 %v572
    %584 = vmatmul.bf16.gmra.mxu0 %v142
    %v585 = vpop.f32.mrf.mxu0
    %v586 = vadd.f32 %v562, %v585
    %v587 = vpop.f32.mrf.mxu0
    %588 = vdwg.mxu0
    %v589 = vpack.c.bf16 %v518, %v518
    %v590 = vpack.c.bf16 %v551, %v551
    %v592 = vsel %vm226, %v589, 0
    %v595 = vsel %vm226, %v590, 0
    %597 = vmatpush.bf16.xpose.msra.mxu0 0
    %598 = vmatpush.bf16.xpose.msra.mxu0 0
    %599 = vmatpush.bf16.xpose.msra.mxu0 0
    %600 = vmatpush.bf16.xpose.msra.mxu0 0
    %601 = vmatpush.bf16.xpose.msra.mxu0 0
    %602 = vmatpush.bf16.xpose.msra.mxu0 0
    %603 = vmatpush.bf16.xpose.msra.mxu0 0
    %604 = vmatpush.bf16.xpose.msra.mxu0 %v595
    %605 = vmatmul.bf16.gmra.mxu0 %v592
    %v606 = vpop.f32.mrf.mxu0
    %v607 = vadd.f32 0.0, %v606
    %v608 = vpop.f32.mrf.mxu0
    %609 = vdwg.mxu0
    %v610 = vsel %vm71, -1e+09, %v607
    %v611 = vsel %vm226, %v610, -inf
    %612 = vmax.xlane.f32.xlu0 %v611
    %v613 = vpop.xlane.xlu0 %612
    %v614 = vsub.f32 %v610, %v613
    %v615 = vmul.f32 %v614, 1.442695
    %v616 = vpow.pop %v615
    %v617 = vsel %vm226, %v616, 0.0
    %618 = vadd.xlane.f32.xlu0 %v617
    %v619 = vpop.xlane.xlu0 %618
    %v620 = vrcp.pop %v619
    %v621 = vmul.f32 %v616, %v620
    %v622 = vpack.c.bf16 %v621, %v621
    %v623 = vpack.c.bf16 %v586, %v586
    %v625 = vsel %vm226, %v622, 0
    %v628 = vsel %vm263, %v623, 0
    %630 = vmatpush.bf16.msra.mxu0 0
    %631 = vmatpush.bf16.msra.mxu0 0
    %632 = vmatpush.bf16.msra.mxu0 0
    %633 = vmatpush.bf16.msra.mxu0 0
    %634 = vmatpush.bf16.msra.mxu0 0
    %635 = vmatpush.bf16.msra.mxu0 0
    %636 = vmatpush.bf16.msra.mxu0 0
    %637 = vmatpush.bf16.msra.mxu0 %v628
    %638 = vmatmul.bf16.gmra.mxu0 %v625
    %v639 = vpop.f32.mrf.mxu0
    %v640 = vadd.f32 0.0, %v639
    %v641 = vpop.f32.mrf.mxu0
    %642 = vdwg.mxu0
    %v643 = vpack.c.bf16 %v640, %v640
    %s644 = scalar_lea.vmem %s10, 8
    %v645 = vld [vmem:[%s644] sm:$0xf]
    %v647 = vsel %vm226, %v643, 0
    %v650 = vsel %vm263, %v645, 0
    %652 = vmatpush.bf16.msra.mxu0 0
    %653 = vmatpush.bf16.msra.mxu0 0
    %654 = vmatpush.bf16.msra.mxu0 0
    %655 = vmatpush.bf16.msra.mxu0 0
    %656 = vmatpush.bf16.msra.mxu0 0
    %657 = vmatpush.bf16.msra.mxu0 0
    %658 = vmatpush.bf16.msra.mxu0 0
    %659 = vmatpush.bf16.msra.mxu0 %v650
    %660 = vmatmul.bf16.gmra.mxu0 %v647
    %v661 = vpop.f32.mrf.mxu0
    %v662 = vadd.f32 0.0, %v661
    %v663 = vpop.f32.mrf.mxu0
    %664 = vdwg.mxu0
    %v665 = vadd.f32 %v480, %v662
    %s666 = scalar_lea.vmem %s4, 48
    %v667 = vld [vmem:[%s666] sm:$0xf]
    %v668 = vld [vmem:[%s666 + $0x4] sm:$0xf]
    %v669 = vld [vmem:[%s666 + $0x8] sm:$0xf]
    %v670 = vld [vmem:[%s666 + $0xc] sm:$0xf]
    %s671 = scalar_lea.vmem %s5, 3
    %v672 = vld [vmem:[%s671] sm:$0x1]
    %v674 = vperm.slane %v672, 0
    %v680 = vunpack.c.l.b16 %v667
    %v681 = vunpack.c.l.b16 %v668
    %v682 = vunpack.c.l.b16 %v669
    %v683 = vunpack.c.l.b16 %v670
    %v684 = vpack.c.b16 %v681, %v680
    %v685 = vpack.c.b16 %v683, %v682
    %688 = vmatpush.bf16.msra.mxu0 0
    %689 = vmatpush.bf16.msra.mxu0 0
    %690 = vmatpush.bf16.msra.mxu0 0
    %691 = vmatpush.bf16.msra.mxu0 0
    %692 = vmatpush.bf16.msra.mxu0 0
    %693 = vmatpush.bf16.msra.mxu0 0
    %694 = vmatpush.bf16.msra.mxu0 %v685
    %695 = vmatpush.bf16.msra.mxu0 %v684
    %696 = vmatmul.bf16.gmra.mxu0 %v142
    %v697 = vpop.f32.mrf.mxu0
    %v698 = vadd.f32 %v674, %v697
    %v699 = vpop.f32.mrf.mxu0
    %700 = vdwg.mxu0
    %v701 = vmul.f32 %v698, 0.35355338
    %s702 = scalar_lea.vmem %s6, 48
    %v703 = vld [vmem:[%s702] sm:$0xf]
    %v704 = vld [vmem:[%s702 + $0x4] sm:$0xf]
    %v705 = vld [vmem:[%s702 + $0x8] sm:$0xf]
    %v706 = vld [vmem:[%s702 + $0xc] sm:$0xf]
    %s707 = scalar_lea.vmem %s7, 3
    %v708 = vld [vmem:[%s707] sm:$0x1]
    %v710 = vperm.slane %v708, 0
    %v716 = vunpack.c.l.b16 %v703
    %v717 = vunpack.c.l.b16 %v704
    %v718 = vunpack.c.l.b16 %v705
    %v719 = vunpack.c.l.b16 %v706
    %v720 = vpack.c.b16 %v717, %v716
    %v721 = vpack.c.b16 %v719, %v718
    %724 = vmatpush.bf16.msra.mxu0 0
    %725 = vmatpush.bf16.msra.mxu0 0
    %726 = vmatpush.bf16.msra.mxu0 0
    %727 = vmatpush.bf16.msra.mxu0 0
    %728 = vmatpush.bf16.msra.mxu0 0
    %729 = vmatpush.bf16.msra.mxu0 0
    %730 = vmatpush.bf16.msra.mxu0 %v721
    %731 = vmatpush.bf16.msra.mxu0 %v720
    %732 = vmatmul.bf16.gmra.mxu0 %v142
    %v733 = vpop.f32.mrf.mxu0
    %v734 = vadd.f32 %v710, %v733
    %v735 = vpop.f32.mrf.mxu0
    %736 = vdwg.mxu0
    %s737 = scalar_lea.vmem %s8, 48
    %v738 = vld [vmem:[%s737] sm:$0xf]
    %v739 = vld [vmem:[%s737 + $0x4] sm:$0xf]
    %v740 = vld [vmem:[%s737 + $0x8] sm:$0xf]
    %v741 = vld [vmem:[%s737 + $0xc] sm:$0xf]
    %s742 = scalar_lea.vmem %s9, 3
    %v743 = vld [vmem:[%s742] sm:$0x1]
    %v745 = vperm.slane %v743, 0
    %v751 = vunpack.c.l.b16 %v738
    %v752 = vunpack.c.l.b16 %v739
    %v753 = vunpack.c.l.b16 %v740
    %v754 = vunpack.c.l.b16 %v741
    %v755 = vpack.c.b16 %v752, %v751
    %v756 = vpack.c.b16 %v754, %v753
    %759 = vmatpush.bf16.msra.mxu0 0
    %760 = vmatpush.bf16.msra.mxu0 0
    %761 = vmatpush.bf16.msra.mxu0 0
    %762 = vmatpush.bf16.msra.mxu0 0
    %763 = vmatpush.bf16.msra.mxu0 0
    %764 = vmatpush.bf16.msra.mxu0 0
    %765 = vmatpush.bf16.msra.mxu0 %v756
    %766 = vmatpush.bf16.msra.mxu0 %v755
    %767 = vmatmul.bf16.gmra.mxu0 %v142
    %v768 = vpop.f32.mrf.mxu0
    %v769 = vadd.f32 %v745, %v768
    %v770 = vpop.f32.mrf.mxu0
    %771 = vdwg.mxu0
    %v772 = vpack.c.bf16 %v701, %v701
    %v773 = vpack.c.bf16 %v734, %v734
    %v775 = vsel %vm226, %v772, 0
    %v778 = vsel %vm226, %v773, 0
    %780 = vmatpush.bf16.xpose.msra.mxu0 0
    %781 = vmatpush.bf16.xpose.msra.mxu0 0
    %782 = vmatpush.bf16.xpose.msra.mxu0 0
    %783 = vmatpush.bf16.xpose.msra.mxu0 0
    %784 = vmatpush.bf16.xpose.msra.mxu0 0
    %785 = vmatpush.bf16.xpose.msra.mxu0 0
    %786 = vmatpush.bf16.xpose.msra.mxu0 0
    %787 = vmatpush.bf16.xpose.msra.mxu0 %v778
    %788 = vmatmul.bf16.gmra.mxu0 %v775
    %v789 = vpop.f32.mrf.mxu0
    %v790 = vadd.f32 0.0, %v789
    %v791 = vpop.f32.mrf.mxu0
    %792 = vdwg.mxu0
    %v793 = vsel %vm71, -1e+09, %v790
    %v794 = vsel %vm226, %v793, -inf
    %795 = vmax.xlane.f32.xlu0 %v794
    %v796 = vpop.xlane.xlu0 %795
    %v797 = vsub.f32 %v793, %v796
    %v798 = vmul.f32 %v797, 1.442695
    %v799 = vpow.pop %v798
    %v800 = vsel %vm226, %v799, 0.0
    %801 = vadd.xlane.f32.xlu0 %v800
    %v802 = vpop.xlane.xlu0 %801
    %v803 = vrcp.pop %v802
    %v804 = vmul.f32 %v799, %v803
    %v805 = vpack.c.bf16 %v804, %v804
    %v806 = vpack.c.bf16 %v769, %v769
    %v808 = vsel %vm226, %v805, 0
    %v811 = vsel %vm263, %v806, 0
    %813 = vmatpush.bf16.msra.mxu0 0
    %814 = vmatpush.bf16.msra.mxu0 0
    %815 = vmatpush.bf16.msra.mxu0 0
    %816 = vmatpush.bf16.msra.mxu0 0
    %817 = vmatpush.bf16.msra.mxu0 0
    %818 = vmatpush.bf16.msra.mxu0 0
    %819 = vmatpush.bf16.msra.mxu0 0
    %820 = vmatpush.bf16.msra.mxu0 %v811
    %821 = vmatmul.bf16.gmra.mxu0 %v808
    %v822 = vpop.f32.mrf.mxu0
    %v823 = vadd.f32 0.0, %v822
    %v824 = vpop.f32.mrf.mxu0
    %825 = vdwg.mxu0
    %v826 = vpack.c.bf16 %v823, %v823
    %s827 = scalar_lea.vmem %s10, 12
    %v828 = vld [vmem:[%s827] sm:$0xf]
    %v830 = vsel %vm226, %v826, 0
    %v833 = vsel %vm263, %v828, 0
    %835 = vmatpush.bf16.msra.mxu0 0
    %836 = vmatpush.bf16.msra.mxu0 0
    %837 = vmatpush.bf16.msra.mxu0 0
    %838 = vmatpush.bf16.msra.mxu0 0
    %839 = vmatpush.bf16.msra.mxu0 0
    %840 = vmatpush.bf16.msra.mxu0 0
    %841 = vmatpush.bf16.msra.mxu0 0
    %842 = vmatpush.bf16.msra.mxu0 %v833
    %843 = vmatmul.bf16.gmra.mxu0 %v830
    %v844 = vpop.f32.mrf.mxu0
    %v845 = vadd.f32 0.0, %v844
    %v846 = vpop.f32.mrf.mxu0
    %847 = vdwg.mxu0
    %v848 = vadd.f32 %v665, %v845
    %v850 = vperm.slane %v65, 0
    %v852 = vadd.f32 %v848, %v850
    %v853 = vadd.f32 %v68, %v852
    %v854 = vsel %vm72, %v853, 0.0
    %855 = vadd.xlane.f32.xlu0 %v854
    %v856 = vpop.xlane.xlu0 %855
    %v857 = vmul.f32 %v856, %v82
    %v858 = vsub.f32 %v853, %v857
    %v859 = vmul.f32 %v858, %v858
    %v860 = vsel %vm72, %v859, 0.0
    %861 = vadd.xlane.f32.xlu0 %v860
    %v862 = vpop.xlane.xlu0 %861
    %v863 = vmul.f32 %v862, %v95
    %v864 = vrsqrt.pop %v863
    %v865 = vmul.f32 %v864, %v863
    %v866 = vmul.f32 %v865, %v864
    %v867 = vmul.f32 0.5, %v866
    %v868 = vsub.f32 1.5, %v867
    %v869 = vmul.f32 %v864, %v868
    %v870 = vmul.f32 %v863, %v869
    %vm871 = vcmp.eq.f32.partialorder %v863, inf
    %v872 = vsel %vm871, %v863, %v870
    %vm873 = vcmp.eq.f32.partialorder %v863, 0.0
    %v874 = vand.u32 %v863, 2147483648
    %v875 = vsel %vm873, %v874, %v872
    %v876 = vadd.f32 %v875, 1e-06
    %v877 = vrcp.pop %v876
    %v878 = vmul.f32 %v858, %v877
    %v880 = vperm.slane %v63, 0
    %v882 = vmul.f32 %v880, %v878
    %v884 = vperm.slane %v64, 0
    %v886 = vadd.f32 %v882, %v884
    %v887 = vpack.c.bf16 %v886, %v886
    %v888 = vld [vmem:[%s14] sm:$0xf]
    %v889 = vld [vmem:[%s14 + $0x4] sm:$0xf]
    %v890 = vld [vmem:[%s14 + $0x8] sm:$0xf]
    %v891 = vld [vmem:[%s14 + $0xc] sm:$0xf]
    %v893 = vperm.slane %v66, 0
    %v899 = vunpack.c.l.b16 %v888
    %v900 = vunpack.c.l.b16 %v889
    %v901 = vunpack.c.l.b16 %v890
    %v902 = vunpack.c.l.b16 %v891
    %v903 = vpack.c.b16 %v900, %v899
    %v904 = vpack.c.b16 %v902, %v901
    %v908 = vsel %vm72, %v887, 0
    %910 = vmatpush.bf16.msra.mxu0 0
    %911 = vmatpush.bf16.msra.mxu0 0
    %912 = vmatpush.bf16.msra.mxu0 0
    %913 = vmatpush.bf16.msra.mxu0 0
    %914 = vmatpush.bf16.msra.mxu0 0
    %915 = vmatpush.bf16.msra.mxu0 0
    %916 = vmatpush.bf16.msra.mxu0 %v904
    %917 = vmatpush.bf16.msra.mxu0 %v903
    %918 = vmatmul.bf16.gmra.mxu0 %v908
    %v919 = vpop.f32.mrf.mxu0
    %v920 = vadd.f32 %v893, %v919
    %v921 = vpop.f32.mrf.mxu0
    %922 = vdwg.mxu0
    %v923 = vmax.f32 %v920, 0.0
    %v924 = vpack.c.bf16 %v923, %v923
    %v925 = vld [vmem:[%s16] sm:$0xf]
    %v926 = vld [vmem:[%s16 + $0x4] sm:$0xf]
    %v927 = vld [vmem:[%s16 + $0x8] sm:$0xf]
    %v928 = vld [vmem:[%s16 + $0xc] sm:$0xf]
    %v929 = vld [vmem:[%s16 + $0x10] sm:$0xf]
    %v930 = vld [vmem:[%s16 + $0x14] sm:$0xf]
    %v931 = vld [vmem:[%s16 + $0x18] sm:$0xf]
    %v932 = vld [vmem:[%s16 + $0x1c] sm:$0xf]
    %v934 = vperm.slane %v67, 0
    %v944 = vunpack.c.l.b16 %v925
    %v945 = vunpack.c.l.b16 %v926
    %v946 = vunpack.c.l.b16 %v927
    %v947 = vunpack.c.l.b16 %v928
    %v948 = vunpack.c.l.b16 %v929
    %v949 = vunpack.c.l.b16 %v930
    %v950 = vunpack.c.l.b16 %v931
    %v951 = vunpack.c.l.b16 %v932
    %v952 = vpack.c.b16 %v945, %v944
    %v953 = vpack.c.b16 %v947, %v946
    %v954 = vpack.c.b16 %v949, %v948
    %v955 = vpack.c.b16 %v951, %v950
    %vm960 = vcmask 523264
    %v962 = vsel %vm960, %v924, 0
    %964 = vmatpush.bf16.msra.mxu0 0
    %965 = vmatpush.bf16.msra.mxu0 0
    %966 = vmatpush.bf16.msra.mxu0 0
    %967 = vmatpush.bf16.msra.mxu0 0
    %968 = vmatpush.bf16.msra.mxu0 %v955
    %969 = vmatpush.bf16.msra.mxu0 %v954
    %970 = vmatpush.bf16.msra.mxu0 %v953
    %971 = vmatpush.bf16.msra.mxu0 %v952
    %972 = vmatmul.bf16.gmra.mxu0 %v962
    %v973 = vpop.f32.mrf.mxu0
    %v974 = vadd.f32 %v934, %v973
    %v975 = vpop.f32.mrf.mxu0
    %976 = vdwg.mxu0
    %v977 = vadd.f32 %v853, %v974
    %978 = vst.msk [vmem:[#allocation2] sm:$0xff] %vm72, %v977
    %s979 = scalar_lea.vmem %s0, 8
    %v980 = vld [vmem:[%s979] sm:$0xff]
    %s981 = scalar_lea.vmem %s1, 2
    %v982 = vld [vmem:[%s981] sm:$0x3]
    %v983 = vunpack.c.0.s8 %v982
    %vm984 = vcmp.eq.s32.totalorder %v983, 0
    %v985 = vsel %vm72, %v980, 0.0
    %986 = vadd.xlane.f32.xlu0 %v985
    %v987 = vpop.xlane.xlu0 %986
    %v988 = vmul.f32 %v987, %v82
    %v989 = vsub.f32 %v980, %v988
    %v990 = vmul.f32 %v989, %v989
    %v991 = vsel %vm72, %v990, 0.0
    %992 = vadd.xlane.f32.xlu0 %v991
    %v993 = vpop.xlane.xlu0 %992
    %v994 = vmul.f32 %v993, %v95
    %v995 = vrsqrt.pop %v994
    %v996 = vmul.f32 %v995, %v994
    %v997 = vmul.f32 %v996, %v995
    %v998 = vmul.f32 0.5, %v997
    %v999 = vsub.f32 1.5, %v998
    %v1000 = vmul.f32 %v995, %v999
    %v1001 = vmul.f32 %v994, %v1000
    %vm1002 = vcmp.eq.f32.partialorder %v994, inf
    %v1003 = vsel %vm1002, %v994, %v1001
    %vm1004 = vcmp.eq.f32.partialorder %v994, 0.0
    %v1005 = vand.u32 %v994, 2147483648
    %v1006 = vsel %vm1004, %v1005, %v1003
    %v1007 = vadd.f32 %v1006, 1e-06
    %v1008 = vrcp.pop %v1007
    %v1009 = vmul.f32 %v989, %v1008
    %v1010 = vmul.f32 %v113, %v1009
    %v1011 = vadd.f32 %v1010, %v117
    %v1012 = vpack.c.bf16 %v1011, %v1011
    %v1013 = vld [vmem:[%s4] sm:$0xf]
    %v1014 = vld [vmem:[%s4 + $0x4] sm:$0xf]
    %v1015 = vld [vmem:[%s4 + $0x8] sm:$0xf]
    %v1016 = vld [vmem:[%s4 + $0xc] sm:$0xf]
    %v1017 = vld [vmem:[%s5] sm:$0x1]
    %v1019 = vperm.slane %v1017, 0
    %v1025 = vunpack.c.l.b16 %v1013
    %v1026 = vunpack.c.l.b16 %v1014
    %v1027 = vunpack.c.l.b16 %v1015
    %v1028 = vunpack.c.l.b16 %v1016
    %v1029 = vpack.c.b16 %v1026, %v1025
    %v1030 = vpack.c.b16 %v1028, %v1027
    %v1034 = vsel %vm72, %v1012, 0
    %1036 = vmatpush.bf16.msra.mxu0 0
    %1037 = vmatpush.bf16.msra.mxu0 0
    %1038 = vmatpush.bf16.msra.mxu0 0
    %1039 = vmatpush.bf16.msra.mxu0 0
    %1040 = vmatpush.bf16.msra.mxu0 0
    %1041 = vmatpush.bf16.msra.mxu0 0
    %1042 = vmatpush.bf16.msra.mxu0 %v1030
    %1043 = vmatpush.bf16.msra.mxu0 %v1029
    %1044 = vmatmul.bf16.gmra.mxu0 %v1034
    %v1045 = vpop.f32.mrf.mxu0
    %v1046 = vadd.f32 %v1019, %v1045
    %v1047 = vpop.f32.mrf.mxu0
    %1048 = vdwg.mxu0
    %v1049 = vmul.f32 %v1046, 0.35355338
    %v1050 = vld [vmem:[%s6] sm:$0xf]
    %v1051 = vld [vmem:[%s6 + $0x4] sm:$0xf]
    %v1052 = vld [vmem:[%s6 + $0x8] sm:$0xf]
    %v1053 = vld [vmem:[%s6 + $0xc] sm:$0xf]
    %v1054 = vld [vmem:[%s7] sm:$0x1]
    %v1056 = vperm.slane %v1054, 0
    %v1062 = vunpack.c.l.b16 %v1050
    %v1063 = vunpack.c.l.b16 %v1051
    %v1064 = vunpack.c.l.b16 %v1052
    %v1065 = vunpack.c.l.b16 %v1053
    %v1066 = vpack.c.b16 %v1063, %v1062
    %v1067 = vpack.c.b16 %v1065, %v1064
    %1070 = vmatpush.bf16.msra.mxu0 0
    %1071 = vmatpush.bf16.msra.mxu0 0
    %1072 = vmatpush.bf16.msra.mxu0 0
    %1073 = vmatpush.bf16.msra.mxu0 0
    %1074 = vmatpush.bf16.msra.mxu0 0
    %1075 = vmatpush.bf16.msra.mxu0 0
    %1076 = vmatpush.bf16.msra.mxu0 %v1067
    %1077 = vmatpush.bf16.msra.mxu0 %v1066
    %1078 = vmatmul.bf16.gmra.mxu0 %v1034
    %v1079 = vpop.f32.mrf.mxu0
    %v1080 = vadd.f32 %v1056, %v1079
    %v1081 = vpop.f32.mrf.mxu0
    %1082 = vdwg.mxu0
    %v1083 = vld [vmem:[%s8] sm:$0xf]
    %v1084 = vld [vmem:[%s8 + $0x4] sm:$0xf]
    %v1085 = vld [vmem:[%s8 + $0x8] sm:$0xf]
    %v1086 = vld [vmem:[%s8 + $0xc] sm:$0xf]
    %v1087 = vld [vmem:[%s9] sm:$0x1]
    %v1089 = vperm.slane %v1087, 0
    %v1095 = vunpack.c.l.b16 %v1083
    %v1096 = vunpack.c.l.b16 %v1084
    %v1097 = vunpack.c.l.b16 %v1085
    %v1098 = vunpack.c.l.b16 %v1086
    %v1099 = vpack.c.b16 %v1096, %v1095
    %v1100 = vpack.c.b16 %v1098, %v1097
    %1103 = vmatpush.bf16.msra.mxu0 0
    %1104 = vmatpush.bf16.msra.mxu0 0
    %1105 = vmatpush.bf16.msra.mxu0 0
    %1106 = vmatpush.bf16.msra.mxu0 0
    %1107 = vmatpush.bf16.msra.mxu0 0
    %1108 = vmatpush.bf16.msra.mxu0 0
    %1109 = vmatpush.bf16.msra.mxu0 %v1100
    %1110 = vmatpush.bf16.msra.mxu0 %v1099
    %1111 = vmatmul.bf16.gmra.mxu0 %v1034
    %v1112 = vpop.f32.mrf.mxu0
    %v1113 = vadd.f32 %v1089, %v1112
    %v1114 = vpop.f32.mrf.mxu0
    %1115 = vdwg.mxu0
    %v1116 = vpack.c.bf16 %v1049, %v1049
    %v1117 = vpack.c.bf16 %v1080, %v1080
    %v1119 = vsel %vm226, %v1116, 0
    %v1122 = vsel %vm226, %v1117, 0
    %1124 = vmatpush.bf16.xpose.msra.mxu0 0
    %1125 = vmatpush.bf16.xpose.msra.mxu0 0
    %1126 = vmatpush.bf16.xpose.msra.mxu0 0
    %1127 = vmatpush.bf16.xpose.msra.mxu0 0
    %1128 = vmatpush.bf16.xpose.msra.mxu0 0
    %1129 = vmatpush.bf16.xpose.msra.mxu0 0
    %1130 = vmatpush.bf16.xpose.msra.mxu0 0
    %1131 = vmatpush.bf16.xpose.msra.mxu0 %v1122
    %1132 = vmatmul.bf16.gmra.mxu0 %v1119
    %v1133 = vpop.f32.mrf.mxu0
    %v1134 = vadd.f32 0.0, %v1133
    %v1135 = vpop.f32.mrf.mxu0
    %1136 = vdwg.mxu0
    %v1137 = vsel %vm984, -1e+09, %v1134
    %v1138 = vsel %vm226, %v1137, -inf
    %1139 = vmax.xlane.f32.xlu0 %v1138
    %v1140 = vpop.xlane.xlu0 %1139
    %v1141 = vsub.f32 %v1137, %v1140
    %v1142 = vmul.f32 %v1141, 1.442695
    %v1143 = vpow.pop %v1142
    %v1144 = vsel %vm226, %v1143, 0.0
    %1145 = vadd.xlane.f32.xlu0 %v1144
    %v1146 = vpop.xlane.xlu0 %1145
    %v1147 = vrcp.pop %v1146
    %v1148 = vmul.f32 %v1143, %v1147
    %v1149 = vpack.c.bf16 %v1148, %v1148
    %v1150 = vpack.c.bf16 %v1113, %v1113
    %v1152 = vsel %vm226, %v1149, 0
    %v1155 = vsel %vm263, %v1150, 0
    %1157 = vmatpush.bf16.msra.mxu0 0
    %1158 = vmatpush.bf16.msra.mxu0 0
    %1159 = vmatpush.bf16.msra.mxu0 0
    %1160 = vmatpush.bf16.msra.mxu0 0
    %1161 = vmatpush.bf16.msra.mxu0 0
    %1162 = vmatpush.bf16.msra.mxu0 0
    %1163 = vmatpush.bf16.msra.mxu0 0
    %1164 = vmatpush.bf16.msra.mxu0 %v1155
    %1165 = vmatmul.bf16.gmra.mxu0 %v1152
    %v1166 = vpop.f32.mrf.mxu0
    %v1167 = vadd.f32 0.0, %v1166
    %v1168 = vpop.f32.mrf.mxu0
    %1169 = vdwg.mxu0
    %v1170 = vpack.c.bf16 %v1167, %v1167
    %v1171 = vld [vmem:[%s10] sm:$0xf]
    %v1172 = vld [vmem:[%s282] sm:$0xf]
    %v1173 = vld [vmem:[%s282 + $0x4] sm:$0xf]
    %v1174 = vld [vmem:[%s282 + $0x8] sm:$0xf]
    %v1175 = vld [vmem:[%s282 + $0xc] sm:$0xf]
    %v1176 = vld [vmem:[%s287] sm:$0x1]
    %v1178 = vperm.slane %v1176, 0
    %v1184 = vunpack.c.l.b16 %v1172
    %v1185 = vunpack.c.l.b16 %v1173
    %v1186 = vunpack.c.l.b16 %v1174
    %v1187 = vunpack.c.l.b16 %v1175
    %v1188 = vpack.c.b16 %v1185, %v1184
    %v1189 = vpack.c.b16 %v1187, %v1186
    %1192 = vmatpush.bf16.msra.mxu0 0
    %1193 = vmatpush.bf16.msra.mxu0 0
    %1194 = vmatpush.bf16.msra.mxu0 0
    %1195 = vmatpush.bf16.msra.mxu0 0
    %1196 = vmatpush.bf16.msra.mxu0 0
    %1197 = vmatpush.bf16.msra.mxu0 0
    %1198 = vmatpush.bf16.msra.mxu0 %v1189
    %1199 = vmatpush.bf16.msra.mxu0 %v1188
    %1200 = vmatmul.bf16.gmra.mxu0 %v1034
    %v1201 = vpop.f32.mrf.mxu0
    %v1202 = vadd.f32 %v1178, %v1201
    %v1203 = vpop.f32.mrf.mxu0
    %1204 = vdwg.mxu0
    %v1205 = vmul.f32 %v1202, 0.35355338
    %v1206 = vld [vmem:[%s318] sm:$0xf]
    %v1207 = vld [vmem:[%s318 + $0x4] sm:$0xf]
    %v1208 = vld [vmem:[%s318 + $0x8] sm:$0xf]
    %v1209 = vld [vmem:[%s318 + $0xc] sm:$0xf]
    %v1210 = vld [vmem:[%s323] sm:$0x1]
    %v1212 = vperm.slane %v1210, 0
    %v1218 = vunpack.c.l.b16 %v1206
    %v1219 = vunpack.c.l.b16 %v1207
    %v1220 = vunpack.c.l.b16 %v1208
    %v1221 = vunpack.c.l.b16 %v1209
    %v1222 = vpack.c.b16 %v1219, %v1218
    %v1223 = vpack.c.b16 %v1221, %v1220
    %1226 = vmatpush.bf16.msra.mxu0 0
    %1227 = vmatpush.bf16.msra.mxu0 0
    %1228 = vmatpush.bf16.msra.mxu0 0
    %1229 = vmatpush.bf16.msra.mxu0 0
    %1230 = vmatpush.bf16.msra.mxu0 0
    %1231 = vmatpush.bf16.msra.mxu0 0
    %1232 = vmatpush.bf16.msra.mxu0 %v1223
    %1233 = vmatpush.bf16.msra.mxu0 %v1222
    %1234 = vmatmul.bf16.gmra.mxu0 %v1034
    %v1235 = vpop.f32.mrf.mxu0
    %v1236 = vadd.f32 %v1212, %v1235
    %v1237 = vpop.f32.mrf.mxu0
    %1238 = vdwg.mxu0
    %v1239 = vld [vmem:[%s353] sm:$0xf]
    %v1240 = vld [vmem:[%s353 + $0x4] sm:$0xf]
    %v1241 = vld [vmem:[%s353 + $0x8] sm:$0xf]
    %v1242 = vld [vmem:[%s353 + $0xc] sm:$0xf]
    %v1243 = vld [vmem:[%s358] sm:$0x1]
    %v1245 = vperm.slane %v1243, 0
    %v1251 = vunpack.c.l.b16 %v1239
    %v1252 = vunpack.c.l.b16 %v1240
    %v1253 = vunpack.c.l.b16 %v1241
    %v1254 = vunpack.c.l.b16 %v1242
    %v1255 = vpack.c.b16 %v1252, %v1251
    %v1256 = vpack.c.b16 %v1254, %v1253
    %1259 = vmatpush.bf16.msra.mxu0 0
    %1260 = vmatpush.bf16.msra.mxu0 0
    %1261 = vmatpush.bf16.msra.mxu0 0
    %1262 = vmatpush.bf16.msra.mxu0 0
    %1263 = vmatpush.bf16.msra.mxu0 0
    %1264 = vmatpush.bf16.msra.mxu0 0
    %1265 = vmatpush.bf16.msra.mxu0 %v1256
    %1266 = vmatpush.bf16.msra.mxu0 %v1255
    %1267 = vmatmul.bf16.gmra.mxu0 %v1034
    %v1268 = vpop.f32.mrf.mxu0
    %v1269 = vadd.f32 %v1245, %v1268
    %v1270 = vpop.f32.mrf.mxu0
    %1271 = vdwg.mxu0
    %v1272 = vpack.c.bf16 %v1205, %v1205
    %v1273 = vpack.c.bf16 %v1236, %v1236
    %v1275 = vsel %vm226, %v1272, 0
    %v1278 = vsel %vm226, %v1273, 0
    %1280 = vmatpush.bf16.xpose.msra.mxu0 0
    %1281 = vmatpush.bf16.xpose.msra.mxu0 0
    %1282 = vmatpush.bf16.xpose.msra.mxu0 0
    %1283 = vmatpush.bf16.xpose.msra.mxu0 0
    %1284 = vmatpush.bf16.xpose.msra.mxu0 0
    %1285 = vmatpush.bf16.xpose.msra.mxu0 0
    %1286 = vmatpush.bf16.xpose.msra.mxu0 0
    %1287 = vmatpush.bf16.xpose.msra.mxu0 %v1278
    %1288 = vmatmul.bf16.gmra.mxu0 %v1275
    %v1289 = vpop.f32.mrf.mxu0
    %v1290 = vadd.f32 0.0, %v1289
    %v1291 = vpop.f32.mrf.mxu0
    %1292 = vdwg.mxu0
    %v1293 = vsel %vm984, -1e+09, %v1290
    %v1294 = vsel %vm226, %v1293, -inf
    %1295 = vmax.xlane.f32.xlu0 %v1294
    %v1296 = vpop.xlane.xlu0 %1295
    %v1297 = vsub.f32 %v1293, %v1296
    %v1298 = vmul.f32 %v1297, 1.442695
    %v1299 = vpow.pop %v1298
    %v1300 = vsel %vm226, %v1299, 0.0
    %1301 = vadd.xlane.f32.xlu0 %v1300
    %v1302 = vpop.xlane.xlu0 %1301
    %v1303 = vrcp.pop %v1302
    %v1304 = vmul.f32 %v1299, %v1303
    %v1305 = vpack.c.bf16 %v1304, %v1304
    %v1306 = vpack.c.bf16 %v1269, %v1269
    %v1308 = vsel %vm226, %v1305, 0
    %v1311 = vsel %vm263, %v1306, 0
    %1313 = vmatpush.bf16.msra.mxu0 0
    %1314 = vmatpush.bf16.msra.mxu0 0
    %1315 = vmatpush.bf16.msra.mxu0 0
    %1316 = vmatpush.bf16.msra.mxu0 0
    %1317 = vmatpush.bf16.msra.mxu0 0
    %1318 = vmatpush.bf16.msra.mxu0 0
    %1319 = vmatpush.bf16.msra.mxu0 0
    %1320 = vmatpush.bf16.msra.mxu0 %v1311
    %1321 = vmatmul.bf16.gmra.mxu0 %v1308
    %v1322 = vpop.f32.mrf.mxu0
    %v1323 = vadd.f32 0.0, %v1322
    %v1324 = vpop.f32.mrf.mxu0
    %1325 = vdwg.mxu0
    %v1326 = vpack.c.bf16 %v1323, %v1323
    %v1327 = vld [vmem:[%s443] sm:$0xf]
    %v1329 = vsel %vm226, %v1326, 0
    %v1332 = vsel %vm263, %v1327, 0
    %1334 = vmatpush.bf16.msra.mxu0 0
    %1335 = vmatpush.bf16.msra.mxu0 0
    %1336 = vmatpush.bf16.msra.mxu0 0
    %1337 = vmatpush.bf16.msra.mxu0 0
    %1338 = vmatpush.bf16.msra.mxu0 0
    %1339 = vmatpush.bf16.msra.mxu0 0
    %1340 = vmatpush.bf16.msra.mxu0 0
    %1341 = vmatpush.bf16.msra.mxu0 %v1332
    %1342 = vmatmul.bf16.gmra.mxu0 %v1329
    %v1343 = vpop.f32.mrf.mxu0
    %v1344 = vadd.f32 0.0, %v1343
    %v1345 = vpop.f32.mrf.mxu0
    %1346 = vdwg.mxu0
    %v1348 = vsel %vm226, %v1170, 0
    %v1351 = vsel %vm263, %v1171, 0
    %1353 = vmatpush.bf16.msra.mxu0 0
    %1354 = vmatpush.bf16.msra.mxu0 0
    %1355 = vmatpush.bf16.msra.mxu0 0
    %1356 = vmatpush.bf16.msra.mxu0 0
    %1357 = vmatpush.bf16.msra.mxu0 0
    %1358 = vmatpush.bf16.msra.mxu0 0
    %1359 = vmatpush.bf16.msra.mxu0 0
    %1360 = vmatpush.bf16.msra.mxu0 %v1351
    %1361 = vmatmul.bf16.gmra.mxu0 %v1348
    %v1362 = vpop.f32.mrf.mxu0
    %v1363 = vadd.f32 %v1344, %v1362
    %v1364 = vpop.f32.mrf.mxu0
    %1365 = vdwg.mxu0
    %v1366 = vld [vmem:[%s483] sm:$0xf]
    %v1367 = vld [vmem:[%s483 + $0x4] sm:$0xf]
    %v1368 = vld [vmem:[%s483 + $0x8] sm:$0xf]
    %v1369 = vld [vmem:[%s483 + $0xc] sm:$0xf]
    %v1370 = vld [vmem:[%s488] sm:$0x1]
    %v1372 = vperm.slane %v1370, 0
    %v1378 = vunpack.c.l.b16 %v1366
    %v1379 = vunpack.c.l.b16 %v1367
    %v1380 = vunpack.c.l.b16 %v1368
    %v1381 = vunpack.c.l.b16 %v1369
    %v1382 = vpack.c.b16 %v1379, %v1378
    %v1383 = vpack.c.b16 %v1381, %v1380
    %1386 = vmatpush.bf16.msra.mxu0 0
    %1387 = vmatpush.bf16.msra.mxu0 0
    %1388 = vmatpush.bf16.msra.mxu0 0
    %1389 = vmatpush.bf16.msra.mxu0 0
    %1390 = vmatpush.bf16.msra.mxu0 0
    %1391 = vmatpush.bf16.msra.mxu0 0
    %1392 = vmatpush.bf16.msra.mxu0 %v1383
    %1393 = vmatpush.bf16.msra.mxu0 %v1382
    %1394 = vmatmul.bf16.gmra.mxu0 %v1034
    %v1395 = vpop.f32.mrf.mxu0
    %v1396 = vadd.f32 %v1372, %v1395
    %v1397 = vpop.f32.mrf.mxu0
    %1398 = vdwg.mxu0
    %v1399 = vmul.f32 %v1396, 0.35355338
    %v1400 = vld [vmem:[%s519] sm:$0xf]
    %v1401 = vld [vmem:[%s519 + $0x4] sm:$0xf]
    %v1402 = vld [vmem:[%s519 + $0x8] sm:$0xf]
    %v1403 = vld [vmem:[%s519 + $0xc] sm:$0xf]
    %v1404 = vld [vmem:[%s524] sm:$0x1]
    %v1406 = vperm.slane %v1404, 0
    %v1412 = vunpack.c.l.b16 %v1400
    %v1413 = vunpack.c.l.b16 %v1401
    %v1414 = vunpack.c.l.b16 %v1402
    %v1415 = vunpack.c.l.b16 %v1403
    %v1416 = vpack.c.b16 %v1413, %v1412
    %v1417 = vpack.c.b16 %v1415, %v1414
    %1420 = vmatpush.bf16.msra.mxu0 0
    %1421 = vmatpush.bf16.msra.mxu0 0
    %1422 = vmatpush.bf16.msra.mxu0 0
    %1423 = vmatpush.bf16.msra.mxu0 0
    %1424 = vmatpush.bf16.msra.mxu0 0
    %1425 = vmatpush.bf16.msra.mxu0 0
    %1426 = vmatpush.bf16.msra.mxu0 %v1417
    %1427 = vmatpush.bf16.msra.mxu0 %v1416
    %1428 = vmatmul.bf16.gmra.mxu0 %v1034
    %v1429 = vpop.f32.mrf.mxu0
    %v1430 = vadd.f32 %v1406, %v1429
    %v1431 = vpop.f32.mrf.mxu0
    %1432 = vdwg.mxu0
    %v1433 = vld [vmem:[%s554] sm:$0xf]
    %v1434 = vld [vmem:[%s554 + $0x4] sm:$0xf]
    %v1435 = vld [vmem:[%s554 + $0x8] sm:$0xf]
    %v1436 = vld [vmem:[%s554 + $0xc] sm:$0xf]
    %v1437 = vld [vmem:[%s559] sm:$0x1]
    %v1439 = vperm.slane %v1437, 0
    %v1445 = vunpack.c.l.b16 %v1433
    %v1446 = vunpack.c.l.b16 %v1434
    %v1447 = vunpack.c.l.b16 %v1435
    %v1448 = vunpack.c.l.b16 %v1436
    %v1449 = vpack.c.b16 %v1446, %v1445
    %v1450 = vpack.c.b16 %v1448, %v1447
    %1453 = vmatpush.bf16.msra.mxu0 0
    %1454 = vmatpush.bf16.msra.mxu0 0
    %1455 = vmatpush.bf16.msra.mxu0 0
    %1456 = vmatpush.bf16.msra.mxu0 0
    %1457 = vmatpush.bf16.msra.mxu0 0
    %1458 = vmatpush.bf16.msra.mxu0 0
    %1459 = vmatpush.bf16.msra.mxu0 %v1450
    %1460 = vmatpush.bf16.msra.mxu0 %v1449
    %1461 = vmatmul.bf16.gmra.mxu0 %v1034
    %v1462 = vpop.f32.mrf.mxu0
    %v1463 = vadd.f32 %v1439, %v1462
    %v1464 = vpop.f32.mrf.mxu0
    %1465 = vdwg.mxu0
    %v1466 = vpack.c.bf16 %v1399, %v1399
    %v1467 = vpack.c.bf16 %v1430, %v1430
    %v1469 = vsel %vm226, %v1466, 0
    %v1472 = vsel %vm226, %v1467, 0
    %1474 = vmatpush.bf16.xpose.msra.mxu0 0
    %1475 = vmatpush.bf16.xpose.msra.mxu0 0
    %1476 = vmatpush.bf16.xpose.msra.mxu0 0
    %1477 = vmatpush.bf16.xpose.msra.mxu0 0
    %1478 = vmatpush.bf16.xpose.msra.mxu0 0
    %1479 = vmatpush.bf16.xpose.msra.mxu0 0
    %1480 = vmatpush.bf16.xpose.msra.mxu0 0
    %1481 = vmatpush.bf16.xpose.msra.mxu0 %v1472
    %1482 = vmatmul.bf16.gmra.mxu0 %v1469
    %v1483 = vpop.f32.mrf.mxu0
    %v1484 = vadd.f32 0.0, %v1483
    %v1485 = vpop.f32.mrf.mxu0
    %1486 = vdwg.mxu0
    %v1487 = vsel %vm984, -1e+09, %v1484
    %v1488 = vsel %vm226, %v1487, -inf
    %1489 = vmax.xlane.f32.xlu0 %v1488
    %v1490 = vpop.xlane.xlu0 %1489
    %v1491 = vsub.f32 %v1487, %v1490
    %v1492 = vmul.f32 %v1491, 1.442695
    %v1493 = vpow.pop %v1492
    %v1494 = vsel %vm226, %v1493, 0.0
    %1495 = vadd.xlane.f32.xlu0 %v1494
    %v1496 = vpop.xlane.xlu0 %1495
    %v1497 = vrcp.pop %v1496
    %v1498 = vmul.f32 %v1493, %v1497
    %v1499 = vpack.c.bf16 %v1498, %v1498
    %v1500 = vpack.c.bf16 %v1463, %v1463
    %v1502 = vsel %vm226, %v1499, 0
    %v1505 = vsel %vm263, %v1500, 0
    %1507 = vmatpush.bf16.msra.mxu0 0
    %1508 = vmatpush.bf16.msra.mxu0 0
    %1509 = vmatpush.bf16.msra.mxu0 0
    %1510 = vmatpush.bf16.msra.mxu0 0
    %1511 = vmatpush.bf16.msra.mxu0 0
    %1512 = vmatpush.bf16.msra.mxu0 0
    %1513 = vmatpush.bf16.msra.mxu0 0
    %1514 = vmatpush.bf16.msra.mxu0 %v1505
    %1515 = vmatmul.bf16.gmra.mxu0 %v1502
    %v1516 = vpop.f32.mrf.mxu0
    %v1517 = vadd.f32 0.0, %v1516
    %v1518 = vpop.f32.mrf.mxu0
    %1519 = vdwg.mxu0
    %v1520 = vpack.c.bf16 %v1517, %v1517
    %v1521 = vld [vmem:[%s644] sm:$0xf]
    %v1523 = vsel %vm226, %v1520, 0
    %v1526 = vsel %vm263, %v1521, 0
    %1528 = vmatpush.bf16.msra.mxu0 0
    %1529 = vmatpush.bf16.msra.mxu0 0
    %1530 = vmatpush.bf16.msra.mxu0 0
    %1531 = vmatpush.bf16.msra.mxu0 0
    %1532 = vmatpush.bf16.msra.mxu0 0
    %1533 = vmatpush.bf16.msra.mxu0 0
    %1534 = vmatpush.bf16.msra.mxu0 0
    %1535 = vmatpush.bf16.msra.mxu0 %v1526
    %1536 = vmatmul.bf16.gmra.mxu0 %v1523
    %v1537 = vpop.f32.mrf.mxu0
    %v1538 = vadd.f32 0.0, %v1537
    %v1539 = vpop.f32.mrf.mxu0
    %1540 = vdwg.mxu0
    %v1541 = vadd.f32 %v1363, %v1538
    %v1542 = vld [vmem:[%s666] sm:$0xf]
    %v1543 = vld [vmem:[%s666 + $0x4] sm:$0xf]
    %v1544 = vld [vmem:[%s666 + $0x8] sm:$0xf]
    %v1545 = vld [vmem:[%s666 + $0xc] sm:$0xf]
    %v1546 = vld [vmem:[%s671] sm:$0x1]
    %v1548 = vperm.slane %v1546, 0
    %v1554 = vunpack.c.l.b16 %v1542
    %v1555 = vunpack.c.l.b16 %v1543
    %v1556 = vunpack.c.l.b16 %v1544
    %v1557 = vunpack.c.l.b16 %v1545
    %v1558 = vpack.c.b16 %v1555, %v1554
    %v1559 = vpack.c.b16 %v1557, %v1556
    %1562 = vmatpush.bf16.msra.mxu0 0
    %1563 = vmatpush.bf16.msra.mxu0 0
    %1564 = vmatpush.bf16.msra.mxu0 0
    %1565 = vmatpush.bf16.msra.mxu0 0
    %1566 = vmatpush.bf16.msra.mxu0 0
    %1567 = vmatpush.bf16.msra.mxu0 0
    %1568 = vmatpush.bf16.msra.mxu0 %v1559
    %1569 = vmatpush.bf16.msra.mxu0 %v1558
    %1570 = vmatmul.bf16.gmra.mxu0 %v1034
    %v1571 = vpop.f32.mrf.mxu0
    %v1572 = vadd.f32 %v1548, %v1571
    %v1573 = vpop.f32.mrf.mxu0
    %1574 = vdwg.mxu0
    %v1575 = vmul.f32 %v1572, 0.35355338
    %v1576 = vld [vmem:[%s702] sm:$0xf]
    %v1577 = vld [vmem:[%s702 + $0x4] sm:$0xf]
    %v1578 = vld [vmem:[%s702 + $0x8] sm:$0xf]
    %v1579 = vld [vmem:[%s702 + $0xc] sm:$0xf]
    %v1580 = vld [vmem:[%s707] sm:$0x1]
    %v1582 = vperm.slane %v1580, 0
    %v1588 = vunpack.c.l.b16 %v1576
    %v1589 = vunpack.c.l.b16 %v1577
    %v1590 = vunpack.c.l.b16 %v1578
    %v1591 = vunpack.c.l.b16 %v1579
    %v1592 = vpack.c.b16 %v1589, %v1588
    %v1593 = vpack.c.b16 %v1591, %v1590
    %1596 = vmatpush.bf16.msra.mxu0 0
    %1597 = vmatpush.bf16.msra.mxu0 0
    %1598 = vmatpush.bf16.msra.mxu0 0
    %1599 = vmatpush.bf16.msra.mxu0 0
    %1600 = vmatpush.bf16.msra.mxu0 0
    %1601 = vmatpush.bf16.msra.mxu0 0
    %1602 = vmatpush.bf16.msra.mxu0 %v1593
    %1603 = vmatpush.bf16.msra.mxu0 %v1592
    %1604 = vmatmul.bf16.gmra.mxu0 %v1034
    %v1605 = vpop.f32.mrf.mxu0
    %v1606 = vadd.f32 %v1582, %v1605
    %v1607 = vpop.f32.mrf.mxu0
    %1608 = vdwg.mxu0
    %v1609 = vld [vmem:[%s737] sm:$0xf]
    %v1610 = vld [vmem:[%s737 + $0x4] sm:$0xf]
    %v1611 = vld [vmem:[%s737 + $0x8] sm:$0xf]
    %v1612 = vld [vmem:[%s737 + $0xc] sm:$0xf]
    %v1613 = vld [vmem:[%s742] sm:$0x1]
    %v1615 = vperm.slane %v1613, 0
    %v1621 = vunpack.c.l.b16 %v1609
    %v1622 = vunpack.c.l.b16 %v1610
    %v1623 = vunpack.c.l.b16 %v1611
    %v1624 = vunpack.c.l.b16 %v1612
    %v1625 = vpack.c.b16 %v1622, %v1621
    %v1626 = vpack.c.b16 %v1624, %v1623
    %1629 = vmatpush.bf16.msra.mxu0 0
    %1630 = vmatpush.bf16.msra.mxu0 0
    %1631 = vmatpush.bf16.msra.mxu0 0
    %1632 = vmatpush.bf16.msra.mxu0 0
    %1633 = vmatpush.bf16.msra.mxu0 0
    %1634 = vmatpush.bf16.msra.mxu0 0
    %1635 = vmatpush.bf16.msra.mxu0 %v1626
    %1636 = vmatpush.bf16.msra.mxu0 %v1625
    %1637 = vmatmul.bf16.gmra.mxu0 %v1034
    %v1638 = vpop.f32.mrf.mxu0
    %v1639 = vadd.f32 %v1615, %v1638
    %v1640 = vpop.f32.mrf.mxu0
    %1641 = vdwg.mxu0
    %v1642 = vpack.c.bf16 %v1575, %v1575
    %v1643 = vpack.c.bf16 %v1606, %v1606
    %v1645 = vsel %vm226, %v1642, 0
    %v1648 = vsel %vm226, %v1643, 0
    %1650 = vmatpush.bf16.xpose.msra.mxu0 0
    %1651 = vmatpush.bf16.xpose.msra.mxu0 0
    %1652 = vmatpush.bf16.xpose.msra.mxu0 0
    %1653 = vmatpush.bf16.xpose.msra.mxu0 0
    %1654 = vmatpush.bf16.xpose.msra.mxu0 0
    %1655 = vmatpush.bf16.xpose.msra.mxu0 0
    %1656 = vmatpush.bf16.xpose.msra.mxu0 0
    %1657 = vmatpush.bf16.xpose.msra.mxu0 %v1648
    %1658 = vmatmul.bf16.gmra.mxu0 %v1645
    %v1659 = vpop.f32.mrf.mxu0
    %v1660 = vadd.f32 0.0, %v1659
    %v1661 = vpop.f32.mrf.mxu0
    %1662 = vdwg.mxu0
    %v1663 = vsel %vm984, -1e+09, %v1660
    %v1664 = vsel %vm226, %v1663, -inf
    %1665 = vmax.xlane.f32.xlu0 %v1664
    %v1666 = vpop.xlane.xlu0 %1665
    %v1667 = vsub.f32 %v1663, %v1666
    %v1668 = vmul.f32 %v1667, 1.442695
    %v1669 = vpow.pop %v1668
    %v1670 = vsel %vm226, %v1669, 0.0
    %1671 = vadd.xlane.f32.xlu0 %v1670
    %v1672 = vpop.xlane.xlu0 %1671
    %v1673 = vrcp.pop %v1672
    %v1674 = vmul.f32 %v1669, %v1673
    %v1675 = vpack.c.bf16 %v1674, %v1674
    %v1676 = vpack.c.bf16 %v1639, %v1639
    %v1678 = vsel %vm226, %v1675, 0
    %v1681 = vsel %vm263, %v1676, 0
    %1683 = vmatpush.bf16.msra.mxu0 0
    %1684 = vmatpush.bf16.msra.mxu0 0
    %1685 = vmatpush.bf16.msra.mxu0 0
    %1686 = vmatpush.bf16.msra.mxu0 0
    %1687 = vmatpush.bf16.msra.mxu0 0
    %1688 = vmatpush.bf16.msra.mxu0 0
    %1689 = vmatpush.bf16.msra.mxu0 0
    %1690 = vmatpush.bf16.msra.mxu0 %v1681
    %1691 = vmatmul.bf16.gmra.mxu0 %v1678
    %v1692 = vpop.f32.mrf.mxu0
    %v1693 = vadd.f32 0.0, %v1692
    %v1694 = vpop.f32.mrf.mxu0
    %1695 = vdwg.mxu0
    %v1696 = vpack.c.bf16 %v1693, %v1693
    %v1697 = vld [vmem:[%s827] sm:$0xf]
    %v1699 = vsel %vm226, %v1696, 0
    %v1702 = vsel %vm263, %v1697, 0
    %1704 = vmatpush.bf16.msra.mxu0 0
    %1705 = vmatpush.bf16.msra.mxu0 0
    %1706 = vmatpush.bf16.msra.mxu0 0
    %1707 = vmatpush.bf16.msra.mxu0 0
    %1708 = vmatpush.bf16.msra.mxu0 0
    %1709 = vmatpush.bf16.msra.mxu0 0
    %1710 = vmatpush.bf16.msra.mxu0 0
    %1711 = vmatpush.bf16.msra.mxu0 %v1702
    %1712 = vmatmul.bf16.gmra.mxu0 %v1699
    %v1713 = vpop.f32.mrf.mxu0
    %v1714 = vadd.f32 0.0, %v1713
    %v1715 = vpop.f32.mrf.mxu0
    %1716 = vdwg.mxu0
    %v1717 = vadd.f32 %v1541, %v1714
    %v1718 = vadd.f32 %v1717, %v850
    %v1719 = vadd.f32 %v980, %v1718
    %v1720 = vsel %vm72, %v1719, 0.0
    %1721 = vadd.xlane.f32.xlu0 %v1720
    %v1722 = vpop.xlane.xlu0 %1721
    %v1723 = vmul.f32 %v1722, %v82
    %v1724 = vsub.f32 %v1719, %v1723
    %v1725 = vmul.f32 %v1724, %v1724
    %v1726 = vsel %vm72, %v1725, 0.0
    %1727 = vadd.xlane.f32.xlu0 %v1726
    %v1728 = vpop.xlane.xlu0 %1727
    %v1729 = vmul.f32 %v1728, %v95
    %v1730 = vrsqrt.pop %v1729
    %v1731 = vmul.f32 %v1730, %v1729
    %v1732 = vmul.f32 %v1731, %v1730
    %v1733 = vmul.f32 0.5, %v1732
    %v1734 = vsub.f32 1.5, %v1733
    %v1735 = vmul.f32 %v1730, %v1734
    %v1736 = vmul.f32 %v1729, %v1735
    %vm1737 = vcmp.eq.f32.partialorder %v1729, inf
    %v1738 = vsel %vm1737, %v1729, %v1736
    %vm1739 = vcmp.eq.f32.partialorder %v1729, 0.0
    %v1740 = vand.u32 %v1729, 2147483648
    %v1741 = vsel %vm1739, %v1740, %v1738
    %v1742 = vadd.f32 %v1741, 1e-06
    %v1743 = vrcp.pop %v1742
    %v1744 = vmul.f32 %v1724, %v1743
    %v1745 = vmul.f32 %v880, %v1744
    %v1746 = vadd.f32 %v1745, %v884
    %v1747 = vpack.c.bf16 %v1746, %v1746
    %v1748 = vld [vmem:[%s14] sm:$0xf]
    %v1749 = vld [vmem:[%s14 + $0x4] sm:$0xf]
    %v1750 = vld [vmem:[%s14 + $0x8] sm:$0xf]
    %v1751 = vld [vmem:[%s14 + $0xc] sm:$0xf]
    %v1756 = vunpack.c.l.b16 %v1748
    %v1757 = vunpack.c.l.b16 %v1749
    %v1758 = vunpack.c.l.b16 %v1750
    %v1759 = vunpack.c.l.b16 %v1751
    %v1760 = vpack.c.b16 %v1757, %v1756
    %v1761 = vpack.c.b16 %v1759, %v1758
    %v1765 = vsel %vm72, %v1747, 0
    %1767 = vmatpush.bf16.msra.mxu0 0
    %1768 = vmatpush.bf16.msra.mxu0 0
    %1769 = vmatpush.bf16.msra.mxu0 0
    %1770 = vmatpush.bf16.msra.mxu0 0
    %1771 = vmatpush.bf16.msra.mxu0 0
    %1772 = vmatpush.bf16.msra.mxu0 0
    %1773 = vmatpush.bf16.msra.mxu0 %v1761
    %1774 = vmatpush.bf16.msra.mxu0 %v1760
    %1775 = vmatmul.bf16.gmra.mxu0 %v1765
    %v1776 = vpop.f32.mrf.mxu0
    %v1777 = vadd.f32 %v893, %v1776
    %v1778 = vpop.f32.mrf.mxu0
    %1779 = vdwg.mxu0
    %v1780 = vmax.f32 %v1777, 0.0
    %v1781 = vpack.c.bf16 %v1780, %v1780
    %v1782 = vld [vmem:[%s16] sm:$0xf]
    %v1783 = vld [vmem:[%s16 + $0x4] sm:$0xf]
    %v1784 = vld [vmem:[%s16 + $0x8] sm:$0xf]
    %v1785 = vld [vmem:[%s16 + $0xc] sm:$0xf]
    %v1786 = vld [vmem:[%s16 + $0x10] sm:$0xf]
    %v1787 = vld [vmem:[%s16 + $0x14] sm:$0xf]
    %v1788 = vld [vmem:[%s16 + $0x18] sm:$0xf]
    %v1789 = vld [vmem:[%s16 + $0x1c] sm:$0xf]
    %v1798 = vunpack.c.l.b16 %v1782
    %v1799 = vunpack.c.l.b16 %v1783
    %v1800 = vunpack.c.l.b16 %v1784
    %v1801 = vunpack.c.l.b16 %v1785
    %v1802 = vunpack.c.l.b16 %v1786
    %v1803 = vunpack.c.l.b16 %v1787
    %v1804 = vunpack.c.l.b16 %v1788
    %v1805 = vunpack.c.l.b16 %v1789
    %v1806 = vpack.c.b16 %v1799, %v1798
    %v1807 = vpack.c.b16 %v1801, %v1800
    %v1808 = vpack.c.b16 %v1803, %v1802
    %v1809 = vpack.c.b16 %v1805, %v1804
    %v1815 = vsel %vm960, %v1781, 0
    %1817 = vmatpush.bf16.msra.mxu0 0
    %1818 = vmatpush.bf16.msra.mxu0 0
    %1819 = vmatpush.bf16.msra.mxu0 0
    %1820 = vmatpush.bf16.msra.mxu0 0
    %1821 = vmatpush.bf16.msra.mxu0 %v1809
    %1822 = vmatpush.bf16.msra.mxu0 %v1808
    %1823 = vmatpush.bf16.msra.mxu0 %v1807
    %1824 = vmatpush.bf16.msra.mxu0 %v1806
    %1825 = vmatmul.bf16.gmra.mxu0 %v1815
    %v1826 = vpop.f32.mrf.mxu0
    %v1827 = vadd.f32 %v934, %v1826
    %v1828 = vpop.f32.mrf.mxu0
    %1829 = vdwg.mxu0
    %v1830 = vadd.f32 %v1719, %v1827
    %s1831 = scalar_lea.vmem [#allocation2], 8
    %1832 = vst.msk [vmem:[%s1831] sm:$0xff] %vm72, %v1830
    // Predicated region
    $region74: #{tpu_custom_call.1} parent=1 // pred_check
      _
    $region75: #{tpu_custom_call.1} parent=1 // pred_check_branch
      %1834 = sbr.rel (0) target = $region77
    $region76: #{tpu_custom_call.1} parent=1 // pred_region
      %1836 = vsyncadd [#allocation3], 0
      %s1837 = sshll.u32 [#allocation2], 4
      %s1838 = int_to_ptr.vmem [resolvable:$true] %s1837
      %s1839 = sshll.u32 %s18, 4
      %s1840 = int_to_ptr.hbm [resolvable:$true] %s1839
      %1845 = dma.vmem_to_hbm [thread:$0]  %s1838, 256, %s1840, [#allocation3], 128, 128, 8
    $region77: #{tpu_custom_call.1} parent=1 // pred_fallthru
      _
    // Predicated region
    $region78: #{tpu_custom_call.1} parent=1 // pred_check
      _
    $region79: #{tpu_custom_call.1} parent=1 // pred_check_branch
      %1847 = sbr.rel (0) target = $region81
    $region80: #{tpu_custom_call.1} parent=1 // pred_region
      %1849 = dma.done [#allocation3], 256
    $region81: #{tpu_custom_call.1} parent=1 // pred_fallthru
      _
    %1850 = vsyncpa [#allocation3], 1

</llo_original>
